<compile_context>
chip_gen: v7x
topology: tpu7x:2x2x1
jax: 0.10.0
libtpu: 0.0.40
codegen_flags: <defaults>
</compile_context>

<pallas_src>
import math

import jax
import jax.numpy as jnp
from jax import lax
from jax.experimental import pallas as pl
from jax.experimental.pallas import tpu as pltpu  # noqa: F401

# ---- synthetic-encoder config (small, consistent with the module) -------------
B = 2            # batch
S = 8            # sequence length
H = 32           # hidden_size (== backbone.out_channels)
NH = 4           # attention heads
DH = H // NH     # head dim
I = 64           # FFN intermediate size
VOCAB = 16
LN_EPS = 1e-12
DROPOUT_P = 0.0  # sequence_dropout -> identity (eval / p=0)

BS = B * S           # 16 flattened (batch, seq) rows
GK = B * NH * S      # 64 expanded key columns, ordered (batch, head, key)
NEMB = VOCAB + S     # 24 rows of the fused [token; position] embedding table

# ---- weight-slab row offsets (all multiples of 8; every matrix starts at lane 0) ----
R_EMB = 0
R_WQKV = R_EMB + NEMB          # 24
R_WO = R_WQKV + H              # 56
R_WP = R_WO + H                # 88
R_W1 = R_WP + H                # 120
R_W2 = R_W1 + H                # 152
R_REP = R_W2 + I               # 216
R_HBLK = R_REP + GK            # 280
R_SEG = R_HBLK + GK            # 344
R_VEC = R_SEG + GK             # 408
W_ROWS = R_VEC + 16            # 424

# rows inside the packed bias / layernorm block
(ROW_BQKV, ROW_BO, ROW_LN1G, ROW_LN1B, ROW_B1,
 ROW_B2, ROW_LN2G, ROW_LN2B, ROW_BP) = range(9)

# ---- per-call data-slab row offsets -------------------------------------------
R_OH = 0            # one-hot(token || position), (BS, NEMB)
R_BIAS = BS         # additive attention bias, (BS, GK)
DATA_ROWS = 2 * BS  # 32

# ---- packed-output lane layout: [h2 | probs | pooler(all rows)] ----------------
O_HID = 0
O_ATT = H                 # 32
O_POOL = H + GK           # 96
OUT_LANES = H + GK + H    # 128
assert OUT_LANES == 128


def _layernorm(x, g, b):
    mu = jnp.mean(x, axis=-1, keepdims=True)
    var = jnp.mean((x - mu) ** 2, axis=-1, keepdims=True)
    return (x - mu) * lax.rsqrt(var + LN_EPS) * g + b


def _encoder_kernel(data_ref, w_ref, out_ref):
    # ---- per-call activations (one DMA) ---------------------------------------
    oh = data_ref[R_OH:R_OH + BS, :NEMB]            # (BS, NEMB) one-hot(token || position)
    bias = data_ref[R_BIAS:R_BIAS + BS, :GK]        # (BS, GK)   0 keep / -1e9 drop

    # ---- parameters + constant selection matrices (one DMA) -------------------
    emb = w_ref[R_EMB:R_EMB + NEMB, :H]             # (NEMB, H) fused [token; position] table
    wqkv = w_ref[R_WQKV:R_WQKV + H, :3 * H]         # (H, 3H)
    wo = w_ref[R_WO:R_WO + H, :H]
    wp = w_ref[R_WP:R_WP + H, :H]
    w1 = w_ref[R_W1:R_W1 + H, :I]
    w2 = w_ref[R_W2:R_W2 + I, :H]
    rep = w_ref[R_REP:R_REP + GK, :BS]              # (GK, BS) row-replication matrix
    hblk = w_ref[R_HBLK:R_HBLK + GK, :H]            # (GK, H)  per-head feature mask
    seg = w_ref[R_SEG:R_SEG + GK, :GK]              # (GK, GK) same-segment indicator
    vp = w_ref[R_VEC:R_VEC + 16, :]                 # packed bias / layernorm vectors

    b_qkv = vp[ROW_BQKV:ROW_BQKV + 1, :3 * H]
    bo = vp[ROW_BO:ROW_BO + 1, :H]
    ln1g = vp[ROW_LN1G:ROW_LN1G + 1, :H]
    ln1b = vp[ROW_LN1B:ROW_LN1B + 1, :H]
    b1 = vp[ROW_B1:ROW_B1 + 1, :I]
    b2 = vp[ROW_B2:ROW_B2 + 1, :H]
    ln2g = vp[ROW_LN2G:ROW_LN2G + 1, :H]
    ln2b = vp[ROW_LN2B:ROW_LN2B + 1, :H]
    bp = vp[ROW_BP:ROW_BP + 1, :H]

    # ---- embedding: token + position fused into ONE one-hot matmul ------------
    x = jnp.dot(oh, emb, preferred_element_type=jnp.float32)             # (BS, H)

    # ---- fused QKV projection ---------------------------------------------------
    qkv = jnp.dot(x, wqkv, preferred_element_type=jnp.float32) + b_qkv   # (BS, 3H)
    q, k, v = qkv[:, :H], qkv[:, H:2 * H], qkv[:, 2 * H:]

    # ---- all-(batch, head) attention via block-diagonal K/V expansion ----------
    # Expanded column g = b*NH*S + h*S + j.  `rep` replicates source rows on the MXU;
    # `hblk` zeroes features not belonging to column g's head, so single 2D matmuls
    # produce every per-(batch, head) block at once (no per-head loop, no concats).
    k_big = jnp.dot(rep, k, preferred_element_type=jnp.float32) * hblk   # (GK, H)
    v_big = jnp.dot(rep, v, preferred_element_type=jnp.float32) * hblk   # (GK, H)

    scale = 1.0 / math.sqrt(DH)
    s = jnp.einsum('rc,jc->rj', q, k_big,
                   preferred_element_type=jnp.float32) * scale + bias    # (BS, GK)

    # Segmented softmax: one row-global max shift is exact per segment (constant cancels
    # inside each head's segment); per-segment sums come from one matmul with the
    # same-segment indicator.  Exact division (review: approx reciprocal perturbed the
    # returned attention probabilities).  Masked / cross-batch lanes underflow to 0.
    m = jnp.max(s, axis=-1, keepdims=True)
    p = jnp.exp(s - m)
    den = jnp.dot(p, seg, preferred_element_type=jnp.float32) + 1e-20    # eps: dead segments
    probs = p / den                                                      # (BS, GK)

    ctx = jnp.dot(probs, v_big, preferred_element_type=jnp.float32)      # (BS, H)

    # ---- output projection + add&LN --------------------------------------------
    attn_out = jnp.dot(ctx, wo, preferred_element_type=jnp.float32) + bo
    h1 = _layernorm(x + attn_out, ln1g, ln1b)

    # ---- GELU FFN + add&LN -------------------------------------------------------
    f = jnp.dot(h1, w1, preferred_element_type=jnp.float32) + b1
    # TODO(synk): HF-style encoders use exact erf-GELU; tanh approximation kept (EUP-native).
    f = jax.nn.gelu(f, approximate=True)
    f = jnp.dot(f, w2, preferred_element_type=jnp.float32) + b2
    h2 = _layernorm(h1 + f, ln2g, ln2b)

    # ---- pooler: tanh(dense(row)) on ALL rows (MXU has slack); the wrapper keeps
    # the CLS rows 0 and S.  Avoids an in-kernel sublane gather of the CLS tokens.
    pool_all = jnp.tanh(jnp.dot(h2, wp, preferred_element_type=jnp.float32) + bp)

    # ---- single lane-dense 128-wide output slab (one DMA, unmasked stores) -----
    out_ref[...] = jnp.concatenate([h2, probs, pool_all], axis=1)        # (BS, 128)


def _pack_params(p):
    """Pack every parameter and constant selection matrix into ONE (W_ROWS, 128) slab."""
    w_qkv = jnp.concatenate([p["wq"], p["wk"], p["wv"]], axis=1)          # (H, 3H)
    b_qkv = jnp.concatenate([p["bq"], p["bk"], p["bv"]], axis=1)          # (1, 3H)
    emb_pos = jnp.concatenate([p["emb"], p["pos"]], axis=0)               # (NEMB, H)

    g = jnp.arange(GK)
    src_row = (g // (NH * S)) * S + (g % S)
    rep = (src_row[:, None] == jnp.arange(BS)[None, :]).astype(jnp.float32)           # (GK, BS)
    hblk = (((g // S) % NH)[:, None]
            == (jnp.arange(H)[None, :] // DH)).astype(jnp.float32)                    # (GK, H)
    seg = ((g[:, None] // S) == (g[None, :] // S)).astype(jnp.float32)                # (GK, GK)

    vecs = jnp.zeros((16, 128), jnp.float32)
    vecs = vecs.at[ROW_BQKV, :3 * H].set(b_qkv[0])
    vecs = vecs.at[ROW_BO, :H].set(p["bo"][0])
    vecs = vecs.at[ROW_LN1G, :H].set(p["ln1_g"][0])
    vecs = vecs.at[ROW_LN1B, :H].set(p["ln1_b"][0])
    vecs = vecs.at[ROW_B1, :I].set(p["b1"][0])
    vecs = vecs.at[ROW_B2, :H].set(p["b2"][0])
    vecs = vecs.at[ROW_LN2G, :H].set(p["ln2_g"][0])
    vecs = vecs.at[ROW_LN2B, :H].set(p["ln2_b"][0])
    vecs = vecs.at[ROW_BP, :H].set(p["bp"][0])

    slab = jnp.zeros((W_ROWS, 128), jnp.float32)
    slab = slab.at[R_EMB:R_EMB + NEMB, :H].set(emb_pos)
    slab = slab.at[R_WQKV:R_WQKV + H, :3 * H].set(w_qkv)
    slab = slab.at[R_WO:R_WO + H, :H].set(p["wo"])
    slab = slab.at[R_WP:R_WP + H, :H].set(p["wp"])
    slab = slab.at[R_W1:R_W1 + H, :I].set(p["w1"])
    slab = slab.at[R_W2:R_W2 + I, :H].set(p["w2"])
    slab = slab.at[R_REP:R_REP + GK, :BS].set(rep)
    slab = slab.at[R_HBLK:R_HBLK + GK, :H].set(hblk)
    slab = slab.at[R_SEG:R_SEG + GK, :GK].set(seg)
    slab = slab.at[R_VEC:R_VEC + 16, :].set(vecs)
    return slab


def _build_data_slab(input_ids, attention_mask):
    """One-hot(token || position) + expanded additive mask bias, packed into one slab."""
    ids = input_ids.astype(jnp.int32).reshape(BS)
    tok_oh = (ids[:, None] == jnp.arange(VOCAB)[None, :]).astype(jnp.float32)   # (BS, VOCAB)
    pos_oh = jnp.tile(jnp.eye(S, dtype=jnp.float32), (B, 1))                    # (BS, S)
    oh = jnp.concatenate([tok_oh, pos_oh], axis=1)                              # (BS, NEMB)

    maskf = attention_mask.astype(jnp.float32)                                  # (B, S)
    km = jnp.tile(maskf[:, None, :], (1, NH, 1)).reshape(GK)                    # (GK,)
    same_b = ((jnp.arange(BS)[:, None] // S)
              == (jnp.arange(GK)[None, :] // (NH * S))).astype(jnp.float32)     # (BS, GK)
    bias = (same_b * km[None, :] - 1.0) * 1e9                                   # 0 keep / -1e9 drop

    data = jnp.zeros((DATA_ROWS, 128), jnp.float32)
    data = data.at[R_OH:R_OH + BS, :NEMB].set(oh)
    data = data.at[R_BIAS:R_BIAS + BS, :GK].set(bias)
    return data


def sequence_backbone_forward(input_ids, attention_mask, w_slab):
    """Pallas-backed equivalent of SequenceBackbone.forward -> (sequence_output, attentions)."""
    # TODO(synk): SEQUENCES registry / NestedTensor plumbing is not translatable; the
    # encoder is synthesized in-script and (input_ids, attention_mask) are passed directly.
    data = _build_data_slab(input_ids, attention_mask)

    slab = pl.pallas_call(
        _encoder_kernel,
        out_shape=jax.ShapeDtypeStruct((BS, OUT_LANES), jnp.float32),
    )(data, w_slab)

    # ---- backbone glue, mirroring SequenceBackbone.forward ----------------------
    # sequence_dropout with p=0 (eval mode) is the identity.
    last_hidden_state = slab[:, O_HID:O_HID + H].reshape(B, S, H)
    pooler_output = slab[::S, O_POOL:O_POOL + H]                          # CLS rows 0, S
    probs = slab[:, O_ATT:O_ATT + GK].reshape(B, S, B, NH, S)
    attn_probs = jnp.stack([probs[b, :, b] for b in range(B)], axis=0)    # (B, S, NH, S)
    attn_probs = attn_probs.transpose(0, 2, 1, 3)                         # (B, NH, S, S)
    # attentions = torch.stack(sequence_output['attentions'], dim=1): 1 layer -> dim 1
    attentions = attn_probs[:, None]                                      # (B, 1, NH, S, S)

    sequence_output = {
        "last_hidden_state": last_hidden_state,
        "pooler_output": pooler_output,
        "attentions": (attn_probs,),
    }
    return sequence_output, attentions


def _init_params(key):
    ks = jax.random.split(key, 12)
    std = 0.02
    return {
        "emb": jax.random.normal(ks[0], (VOCAB, H), jnp.float32) * std,
        "pos": jax.random.normal(ks[1], (S, H), jnp.float32) * std,
        "wq": jax.random.normal(ks[2], (H, H), jnp.float32) * std,
        "wk": jax.random.normal(ks[3], (H, H), jnp.float32) * std,
        "wv": jax.random.normal(ks[4], (H, H), jnp.float32) * std,
        "wo": jax.random.normal(ks[5], (H, H), jnp.float32) * std,
        "w1": jax.random.normal(ks[6], (H, I), jnp.float32) * std,
        "w2": jax.random.normal(ks[7], (I, H), jnp.float32) * std,
        "wp": jax.random.normal(ks[8], (H, H), jnp.float32) * std,
        "bq": jnp.zeros((1, H), jnp.float32),
        "bk": jnp.zeros((1, H), jnp.float32),
        "bv": jnp.zeros((1, H), jnp.float32),
        "bo": jnp.zeros((1, H), jnp.float32),
        "b1": jnp.zeros((1, I), jnp.float32),
        "b2": jnp.zeros((1, H), jnp.float32),
        "bp": jnp.zeros((1, H), jnp.float32),
        "ln1_g": jnp.ones((1, H), jnp.float32),
        "ln1_b": jnp.zeros((1, H), jnp.float32),
        "ln2_g": jnp.ones((1, H), jnp.float32),
        "ln2_b": jnp.zeros((1, H), jnp.float32),
    }


if __name__ == "__main__":
    key = jax.random.PRNGKey(0)
    k_ids, k_par = jax.random.split(key)

    input_ids = jax.random.randint(k_ids, (B, S), 0, VOCAB, dtype=jnp.int32)
    # second sequence has 2 padding tokens to exercise the attention mask
    attention_mask = jnp.array([[1] * S, [1] * (S - 2) + [0, 0]], dtype=jnp.int32)

    w_slab = _pack_params(_init_params(k_par))

    fwd = jax.jit(sequence_backbone_forward)
    sequence_output, attentions = fwd(input_ids, attention_mask, w_slab)

    jax.block_until_ready(sequence_output["last_hidden_state"])
    jax.block_until_ready(sequence_output["pooler_output"])
    jax.block_until_ready(attentions)

    assert sequence_output["last_hidden_state"].shape == (B, S, H)
    assert sequence_output["pooler_output"].shape == (B, H)
    assert attentions.shape == (B, 1, NH, S, S)

    # sanity: finite outputs, softmax rows sum to 1, padded keys get ~zero attention
    assert bool(jnp.isfinite(sequence_output["last_hidden_state"]).all())
    assert bool(jnp.isfinite(sequence_output["pooler_output"]).all())
    row_sums = attentions.sum(axis=-1)
    assert bool(jnp.all(jnp.abs(row_sums - 1.0) < 1e-3))
    assert bool(jnp.all(attentions[1, 0, :, :, S - 2:] < 1e-6))

    print("KERNEL_OK")
</pallas_src>

<mosaic_0001>
module attributes {stable_mosaic.version = 11 : i64} {
  func.func @_encoder_kernel(%arg0: memref<32x128xf32, #tpu.memory_space<vmem>>, %arg1: memref<424x128xf32, #tpu.memory_space<vmem>>, %arg2: memref<16x128xf32, #tpu.memory_space<vmem>>) attributes {dimension_semantics = [], scalar_prefetch = 0 : i64, scratch_operands = 0 : i64, tpu.core_type = #tpu.core_type<tc>} {
    %c0 = arith.constant 0 : index
    %c0_0 = arith.constant 0 : index
    %0 = vector.load %arg0[%c0, %c0_0] : memref<32x128xf32, #tpu.memory_space<vmem>>, vector<16x24xf32>
    %c16 = arith.constant 16 : index
    %c0_1 = arith.constant 0 : index
    %1 = vector.load %arg0[%c16, %c0_1] : memref<32x128xf32, #tpu.memory_space<vmem>>, vector<16x64xf32>
    %c0_2 = arith.constant 0 : index
    %c0_3 = arith.constant 0 : index
    %2 = vector.load %arg1[%c0_2, %c0_3] : memref<424x128xf32, #tpu.memory_space<vmem>>, vector<24x32xf32>
    %c24 = arith.constant 24 : index
    %c0_4 = arith.constant 0 : index
    %3 = vector.load %arg1[%c24, %c0_4] : memref<424x128xf32, #tpu.memory_space<vmem>>, vector<32x96xf32>
    %c56 = arith.constant 56 : index
    %c0_5 = arith.constant 0 : index
    %4 = vector.load %arg1[%c56, %c0_5] : memref<424x128xf32, #tpu.memory_space<vmem>>, vector<32x32xf32>
    %c88 = arith.constant 88 : index
    %c0_6 = arith.constant 0 : index
    %5 = vector.load %arg1[%c88, %c0_6] : memref<424x128xf32, #tpu.memory_space<vmem>>, vector<32x32xf32>
    %c120 = arith.constant 120 : index
    %c0_7 = arith.constant 0 : index
    %6 = vector.load %arg1[%c120, %c0_7] : memref<424x128xf32, #tpu.memory_space<vmem>>, vector<32x64xf32>
    %c152 = arith.constant 152 : index
    %c0_8 = arith.constant 0 : index
    %7 = vector.load %arg1[%c152, %c0_8] : memref<424x128xf32, #tpu.memory_space<vmem>>, vector<64x32xf32>
    %c216 = arith.constant 216 : index
    %c0_9 = arith.constant 0 : index
    %8 = vector.load %arg1[%c216, %c0_9] : memref<424x128xf32, #tpu.memory_space<vmem>>, vector<64x16xf32>
    %c280 = arith.constant 280 : index
    %c0_10 = arith.constant 0 : index
    %9 = vector.load %arg1[%c280, %c0_10] : memref<424x128xf32, #tpu.memory_space<vmem>>, vector<64x32xf32>
    %c344 = arith.constant 344 : index
    %c0_11 = arith.constant 0 : index
    %10 = vector.load %arg1[%c344, %c0_11] : memref<424x128xf32, #tpu.memory_space<vmem>>, vector<64x64xf32>
    %c408 = arith.constant 408 : index
    %c0_12 = arith.constant 0 : index
    %11 = vector.load %arg1[%c408, %c0_12] : memref<424x128xf32, #tpu.memory_space<vmem>>, vector<16x128xf32>
    %12 = vector.extract_strided_slice %11 {offsets = [0, 0], sizes = [1, 96], strides = [1, 1]} : vector<16x128xf32> to vector<1x96xf32>
    %13 = vector.extract_strided_slice %11 {offsets = [1, 0], sizes = [1, 32], strides = [1, 1]} : vector<16x128xf32> to vector<1x32xf32>
    %14 = vector.extract_strided_slice %11 {offsets = [2, 0], sizes = [1, 32], strides = [1, 1]} : vector<16x128xf32> to vector<1x32xf32>
    %15 = vector.extract_strided_slice %11 {offsets = [3, 0], sizes = [1, 32], strides = [1, 1]} : vector<16x128xf32> to vector<1x32xf32>
    %16 = vector.extract_strided_slice %11 {offsets = [4, 0], sizes = [1, 64], strides = [1, 1]} : vector<16x128xf32> to vector<1x64xf32>
    %17 = vector.extract_strided_slice %11 {offsets = [5, 0], sizes = [1, 32], strides = [1, 1]} : vector<16x128xf32> to vector<1x32xf32>
    %18 = vector.extract_strided_slice %11 {offsets = [6, 0], sizes = [1, 32], strides = [1, 1]} : vector<16x128xf32> to vector<1x32xf32>
    %19 = vector.extract_strided_slice %11 {offsets = [7, 0], sizes = [1, 32], strides = [1, 1]} : vector<16x128xf32> to vector<1x32xf32>
    %20 = vector.extract_strided_slice %11 {offsets = [8, 0], sizes = [1, 32], strides = [1, 1]} : vector<16x128xf32> to vector<1x32xf32>
    %cst = arith.constant dense<0.000000e+00> : vector<16x32xf32>
    %21 = tpu.matmul %0, %2, %cst {dimension_numbers = #tpu.dot_dimension_numbers<[1], [0], [0], [1], [0, 0, 1, 1], [], []>} : vector<16x24xf32>, vector<24x32xf32>, vector<16x32xf32> -> vector<16x32xf32>
    %cst_13 = arith.constant dense<0.000000e+00> : vector<16x96xf32>
    %22 = tpu.matmul %21, %3, %cst_13 {dimension_numbers = #tpu.dot_dimension_numbers<[1], [0], [0], [1], [0, 0, 1, 1], [], []>} : vector<16x32xf32>, vector<32x96xf32>, vector<16x96xf32> -> vector<16x96xf32>
    %23 = vector.broadcast %12 : vector<1x96xf32> to vector<16x96xf32>
    %24 = arith.addf %22, %23 : vector<16x96xf32>
    %25 = vector.extract_strided_slice %24 {offsets = [0, 0], sizes = [16, 32], strides = [1, 1]} : vector<16x96xf32> to vector<16x32xf32>
    %26 = vector.extract_strided_slice %24 {offsets = [0, 32], sizes = [16, 32], strides = [1, 1]} : vector<16x96xf32> to vector<16x32xf32>
    %27 = vector.extract_strided_slice %24 {offsets = [0, 64], sizes = [16, 32], strides = [1, 1]} : vector<16x96xf32> to vector<16x32xf32>
    %cst_14 = arith.constant dense<0.000000e+00> : vector<64x32xf32>
    %28 = tpu.matmul %8, %26, %cst_14 {dimension_numbers = #tpu.dot_dimension_numbers<[1], [0], [0], [1], [0, 0, 1, 1], [], []>} : vector<64x16xf32>, vector<16x32xf32>, vector<64x32xf32> -> vector<64x32xf32>
    %29 = arith.mulf %28, %9 : vector<64x32xf32>
    %cst_15 = arith.constant dense<0.000000e+00> : vector<64x32xf32>
    %30 = tpu.matmul %8, %27, %cst_15 {dimension_numbers = #tpu.dot_dimension_numbers<[1], [0], [0], [1], [0, 0, 1, 1], [], []>} : vector<64x16xf32>, vector<16x32xf32>, vector<64x32xf32> -> vector<64x32xf32>
    %31 = arith.mulf %30, %9 : vector<64x32xf32>
    "tpu.trace_start"() <{level = 10 : i32, message = "rc,jc->rj"}> : () -> ()
    %cst_16 = arith.constant dense<0.000000e+00> : vector<16x64xf32>
    %32 = tpu.matmul %25, %29, %cst_16 {dimension_numbers = #tpu.dot_dimension_numbers<[1], [1], [0], [0], [0, 0, 1, 0], [], []>} : vector<16x32xf32>, vector<64x32xf32>, vector<16x64xf32> -> vector<16x64xf32>
    "tpu.trace_stop"() : () -> ()
    %cst_17 = arith.constant 0.353553385 : f32
    %33 = vector.broadcast %cst_17 : f32 to vector<16x64xf32>
    %34 = arith.mulf %32, %33 : vector<16x64xf32>
    %35 = arith.addf %34, %1 : vector<16x64xf32>
    %cst_18 = arith.constant dense<0xFF800000> : vector<16xf32>
    %36 = vector.multi_reduction <maximumf>, %35, %cst_18 [1] : vector<16x64xf32> to vector<16xf32>
    %37 = vector.shape_cast %36 : vector<16xf32> to vector<16x1xf32>
    %38 = vector.broadcast %37 : vector<16x1xf32> to vector<16x64xf32>
    %39 = arith.subf %35, %38 : vector<16x64xf32>
    %40 = math.exp %39 : vector<16x64xf32>
    %cst_19 = arith.constant dense<0.000000e+00> : vector<16x64xf32>
    %41 = tpu.matmul %40, %10, %cst_19 {dimension_numbers = #tpu.dot_dimension_numbers<[1], [0], [0], [1], [0, 0, 1, 1], [], []>} : vector<16x64xf32>, vector<64x64xf32>, vector<16x64xf32> -> vector<16x64xf32>
    %cst_20 = arith.constant 9.99999968E-21 : f32
    %42 = vector.broadcast %cst_20 : f32 to vector<16x64xf32>
    %43 = arith.addf %41, %42 : vector<16x64xf32>
    %44 = arith.divf %40, %43 : vector<16x64xf32>
    %cst_21 = arith.constant dense<0.000000e+00> : vector<16x32xf32>
    %45 = tpu.matmul %44, %31, %cst_21 {dimension_numbers = #tpu.dot_dimension_numbers<[1], [0], [0], [1], [0, 0, 1, 1], [], []>} : vector<16x64xf32>, vector<64x32xf32>, vector<16x32xf32> -> vector<16x32xf32>
    %cst_22 = arith.constant dense<0.000000e+00> : vector<16x32xf32>
    %46 = tpu.matmul %45, %4, %cst_22 {dimension_numbers = #tpu.dot_dimension_numbers<[1], [0], [0], [1], [0, 0, 1, 1], [], []>} : vector<16x32xf32>, vector<32x32xf32>, vector<16x32xf32> -> vector<16x32xf32>
    %47 = vector.broadcast %13 : vector<1x32xf32> to vector<16x32xf32>
    %48 = arith.addf %46, %47 : vector<16x32xf32>
    %49 = arith.addf %21, %48 : vector<16x32xf32>
    %cst_23 = arith.constant dense<0.000000e+00> : vector<16xf32>
    %50 = vector.multi_reduction <add>, %49, %cst_23 [1] : vector<16x32xf32> to vector<16xf32>
    %51 = vector.shape_cast %50 : vector<16xf32> to vector<16x1xf32>
    %cst_24 = arith.constant 3.200000e+01 : f32
    %52 = vector.broadcast %cst_24 : f32 to vector<16x1xf32>
    %53 = arith.divf %51, %52 : vector<16x1xf32>
    %54 = vector.broadcast %53 : vector<16x1xf32> to vector<16x32xf32>
    %55 = arith.subf %49, %54 : vector<16x32xf32>
    %56 = arith.mulf %55, %55 : vector<16x32xf32>
    %cst_25 = arith.constant dense<0.000000e+00> : vector<16xf32>
    %57 = vector.multi_reduction <add>, %56, %cst_25 [1] : vector<16x32xf32> to vector<16xf32>
    %58 = vector.shape_cast %57 : vector<16xf32> to vector<16x1xf32>
    %cst_26 = arith.constant 3.200000e+01 : f32
    %59 = vector.broadcast %cst_26 : f32 to vector<16x1xf32>
    %60 = arith.divf %58, %59 : vector<16x1xf32>
    %61 = vector.broadcast %53 : vector<16x1xf32> to vector<16x32xf32>
    %62 = arith.subf %49, %61 : vector<16x32xf32>
    %cst_27 = arith.constant 9.99999996E-13 : f32
    %63 = vector.broadcast %cst_27 : f32 to vector<16x1xf32>
    %64 = arith.addf %60, %63 : vector<16x1xf32>
    %65 = math.rsqrt %64 : vector<16x1xf32>
    %66 = vector.broadcast %65 : vector<16x1xf32> to vector<16x32xf32>
    %67 = arith.mulf %62, %66 : vector<16x32xf32>
    %68 = vector.broadcast %14 : vector<1x32xf32> to vector<16x32xf32>
    %69 = arith.mulf %67, %68 : vector<16x32xf32>
    %70 = vector.broadcast %15 : vector<1x32xf32> to vector<16x32xf32>
    %71 = arith.addf %69, %70 : vector<16x32xf32>
    %cst_28 = arith.constant dense<0.000000e+00> : vector<16x64xf32>
    %72 = tpu.matmul %71, %6, %cst_28 {dimension_numbers = #tpu.dot_dimension_numbers<[1], [0], [0], [1], [0, 0, 1, 1], [], []>} : vector<16x32xf32>, vector<32x64xf32>, vector<16x64xf32> -> vector<16x64xf32>
    %73 = vector.broadcast %16 : vector<1x64xf32> to vector<16x64xf32>
    %74 = arith.addf %72, %73 : vector<16x64xf32>
    %75 = arith.mulf %74, %74 : vector<16x64xf32>
    %76 = arith.mulf %74, %75 : vector<16x64xf32>
    %cst_29 = arith.constant 4.471500e-02 : f32
    %77 = vector.broadcast %cst_29 : f32 to vector<16x64xf32>
    %78 = arith.mulf %77, %76 : vector<16x64xf32>
    %79 = arith.addf %74, %78 : vector<16x64xf32>
    %cst_30 = arith.constant 0.797884583 : f32
    %80 = vector.broadcast %cst_30 : f32 to vector<16x64xf32>
    %81 = arith.mulf %80, %79 : vector<16x64xf32>
    %82 = math.tanh %81 : vector<16x64xf32>
    %cst_31 = arith.constant 1.000000e+00 : f32
    %83 = vector.broadcast %cst_31 : f32 to vector<16x64xf32>
    %84 = arith.addf %83, %82 : vector<16x64xf32>
    %cst_32 = arith.constant 5.000000e-01 : f32
    %85 = vector.broadcast %cst_32 : f32 to vector<16x64xf32>
    %86 = arith.mulf %85, %84 : vector<16x64xf32>
    %87 = arith.mulf %74, %86 : vector<16x64xf32>
    %cst_33 = arith.constant dense<0.000000e+00> : vector<16x32xf32>
    %88 = tpu.matmul %87, %7, %cst_33 {dimension_numbers = #tpu.dot_dimension_numbers<[1], [0], [0], [1], [0, 0, 1, 1], [], []>} : vector<16x64xf32>, vector<64x32xf32>, vector<16x32xf32> -> vector<16x32xf32>
    %89 = vector.broadcast %17 : vector<1x32xf32> to vector<16x32xf32>
    %90 = arith.addf %88, %89 : vector<16x32xf32>
    %91 = arith.addf %71, %90 : vector<16x32xf32>
    %cst_34 = arith.constant dense<0.000000e+00> : vector<16xf32>
    %92 = vector.multi_reduction <add>, %91, %cst_34 [1] : vector<16x32xf32> to vector<16xf32>
    %93 = vector.shape_cast %92 : vector<16xf32> to vector<16x1xf32>
    %cst_35 = arith.constant 3.200000e+01 : f32
    %94 = vector.broadcast %cst_35 : f32 to vector<16x1xf32>
    %95 = arith.divf %93, %94 : vector<16x1xf32>
    %96 = vector.broadcast %95 : vector<16x1xf32> to vector<16x32xf32>
    %97 = arith.subf %91, %96 : vector<16x32xf32>
    %98 = arith.mulf %97, %97 : vector<16x32xf32>
    %cst_36 = arith.constant dense<0.000000e+00> : vector<16xf32>
    %99 = vector.multi_reduction <add>, %98, %cst_36 [1] : vector<16x32xf32> to vector<16xf32>
    %100 = vector.shape_cast %99 : vector<16xf32> to vector<16x1xf32>
    %cst_37 = arith.constant 3.200000e+01 : f32
    %101 = vector.broadcast %cst_37 : f32 to vector<16x1xf32>
    %102 = arith.divf %100, %101 : vector<16x1xf32>
    %103 = vector.broadcast %95 : vector<16x1xf32> to vector<16x32xf32>
    %104 = arith.subf %91, %103 : vector<16x32xf32>
    %cst_38 = arith.constant 9.99999996E-13 : f32
    %105 = vector.broadcast %cst_38 : f32 to vector<16x1xf32>
    %106 = arith.addf %102, %105 : vector<16x1xf32>
    %107 = math.rsqrt %106 : vector<16x1xf32>
    %108 = vector.broadcast %107 : vector<16x1xf32> to vector<16x32xf32>
    %109 = arith.mulf %104, %108 : vector<16x32xf32>
    %110 = vector.broadcast %18 : vector<1x32xf32> to vector<16x32xf32>
    %111 = arith.mulf %109, %110 : vector<16x32xf32>
    %112 = vector.broadcast %19 : vector<1x32xf32> to vector<16x32xf32>
    %113 = arith.addf %111, %112 : vector<16x32xf32>
    %cst_39 = arith.constant dense<0.000000e+00> : vector<16x32xf32>
    %114 = tpu.matmul %113, %5, %cst_39 {dimension_numbers = #tpu.dot_dimension_numbers<[1], [0], [0], [1], [0, 0, 1, 1], [], []>} : vector<16x32xf32>, vector<32x32xf32>, vector<16x32xf32> -> vector<16x32xf32>
    %115 = vector.broadcast %20 : vector<1x32xf32> to vector<16x32xf32>
    %116 = arith.addf %114, %115 : vector<16x32xf32>
    %117 = math.tanh %116 : vector<16x32xf32>
    %118 = tpu.concatenate %113, %44, %117 in 1 : vector<16x32xf32>, vector<16x64xf32>, vector<16x32xf32> -> vector<16x128xf32>
    %c0_40 = arith.constant 0 : index
    %c0_41 = arith.constant 0 : index
    %119 = vector.load %arg2[%c0_40, %c0_41] : memref<16x128xf32, #tpu.memory_space<vmem>>, vector<16x128xf32>
    tpu.vector_store %arg2[%c0_40, %c0_41], %118 {strides = array<i32>} : memref<16x128xf32, #tpu.memory_space<vmem>>, vector<16x128xf32>,
    return
  }
}

</mosaic_0001>

<llo_original>
// kernel: eq.16
$region0: #{eq.16}
  %s0 = inlined_call_operand.vmem [shape: s32[2,8], index: 0, kind: input, shape index: {}]
  %s1 = inlined_call_operand.vmem [shape: s32[16], index: 1, kind: output, shape index: {}]
  $region1: #{eq.16} parent=0
    #allocation0 [shape = 'u8[4096]{0}', space=vmem, size = 0x1000, scoped, tag = 'scoped mem for output reshape']
    #allocation1 [shape = 'u8[4096]{0}', space=vmem, size = 0x1000, scoped, tag = 'scoped mem for input reshape']
    %s3 = sshllo.u32 0, 2
    %v4 = vld [vmem:[%s0] sm:%s3]
    %5 = vst [vmem:[#allocation1] sm:%s3] %v4
    %v6 = vld [vmem:[#allocation1] sm:$0x1]
    %vm7 = vcmask 64512
    %8 = vst.msk [vmem:[#allocation0] sm:$0x1] %vm7, %v6
    %s9 = scalar_lea.vmem [#allocation1], 1
    %v10 = vld [vmem:[%s9] sm:$0x1]
    %11 = vrot.lane.b32.xlu0 %v10, 8
    %v12 = vpop.permute.xlu0 %11
    %vm13 = vcmask 130112
    %14 = vst.msk [vmem:[#allocation0] sm:$0x1] %vm13, %v12
    %s16 = sshllo.u32 0, 1
    %v18 = vld [vmem:[#allocation0] sm:%s16]
    %s19 = sshllo.u32 0, 1
    %20 = vst [vmem:[%s1] sm:%s19] %v18

// kernel: sequence_backbone_forward.1
$region0: #{sequence_backbone_forward.1}
  #allocation0 [shape = 'u32[]', space=smem, size = 0x4, offset = 0x4, fixed_abs, tag = 'smem constant byte address 0x4 - core index']
  #allocation1 [shape = 'u32[144,128]{1,0:T(1,128)}', space=vmem, size = 0x12000, scoped, tag = 'internal scratch']
  %s0 = inlined_call_operand.vmem [shape: f32[32,128], index: 0, kind: input, shape index: {}]
  %s1 = inlined_call_operand.hbm [shape: f32[424,128], index: 1, kind: input, shape index: {}]
  %s2 = inlined_call_operand.vmem [shape: f32[16,128], index: 2, kind: output, shape index: {}]
  %s3 = sld [smem:[#allocation0]]
  $region22: #{sequence_backbone_forward.1} parent=0
    _
  %s5 = ssub.s32 1, %s3
  %s6 = scalar_select 0, %s5, %s3
  $region1: #{sequence_backbone_forward.1} parent=0
    #allocation2 [shape = 'u8[217088]{0}', space=vmem, size = 0x35000, scoped, tag = 'input window, operand 1, single buffered']
    #allocation3 [shape = 's32[1]{0}', space=sflag, size = 0x4, scoped, tag = 'scoped memory for sequence_backbone_forward.1']
    %7 = vsyncpa [#allocation3], 0
    // Predicated region
    $region2: #{sequence_backbone_forward.1} parent=1 // pred_check
      _
    $region3: #{sequence_backbone_forward.1} parent=1 // pred_check_branch
      %9 = sbr.rel (0) target = $region5
    $region4: #{sequence_backbone_forward.1} parent=1 // pred_region
      _
    $region5: #{sequence_backbone_forward.1} parent=1 // pred_fallthru
      _
    // Predicated region
    $region6: #{sequence_backbone_forward.1} parent=1 // pred_check
      _
    $region7: #{sequence_backbone_forward.1} parent=1 // pred_check_branch
      %11 = sbr.rel (0) target = $region9
    $region8: #{sequence_backbone_forward.1} parent=1 // pred_region
      %s13 = ssub.s32 6784, 6784
      %14 = vsyncadd [#allocation3], %s13
      %s15 = sshll.u32 [#allocation2], 4
      %s16 = int_to_ptr.vmem [resolvable:$true] %s15
      %21 = dma.hbm_to_vmem [thread:$0]  %s1, 6784, %s16, [#allocation3], 128, 128, 8
    $region9: #{sequence_backbone_forward.1} parent=1 // pred_fallthru
      _
    // Predicated region
    $region10: #{sequence_backbone_forward.1} parent=1 // pred_check
      _
    $region11: #{sequence_backbone_forward.1} parent=1 // pred_check_branch
      %23 = sbr.rel (0) target = $region13
    $region12: #{sequence_backbone_forward.1} parent=1 // pred_region
      %24 = dma.done [#allocation3], 6784
    $region13: #{sequence_backbone_forward.1} parent=1 // pred_fallthru
      _
    %v25 = vld [vmem:[%s0] sm:$0xff]
    %v26 = vld [vmem:[%s0 + $0x8] sm:$0xff]
    %v27 = vld [vmem:[%s0 + $0x10] sm:$0xff]
    %v28 = vld [vmem:[%s0 + $0x18] sm:$0xff]
    %v29 = vld [vmem:[#allocation2] sm:$0xff]
    %v30 = vld [vmem:[#allocation2 + $0x8] sm:$0xff]
    %v31 = vld [vmem:[#allocation2 + $0x10] sm:$0xff]
    %v32 = vld [vmem:[#allocation2 + $0x18] sm:$0xff]
    %v33 = vld [vmem:[#allocation2 + $0x20] sm:$0xff]
    %v34 = vld [vmem:[#allocation2 + $0x28] sm:$0xff]
    %v35 = vld [vmem:[#allocation2 + $0x30] sm:$0xff]
    %v36 = vld [vmem:[#allocation2 + $0x38] sm:$0xff]
    %v37 = vld [vmem:[#allocation2 + $0x40] sm:$0xff]
    %v38 = vld [vmem:[#allocation2 + $0x48] sm:$0xff]
    %v39 = vld [vmem:[#allocation2 + $0x50] sm:$0xff]
    %v40 = vld [vmem:[#allocation2 + $0x58] sm:$0xff]
    %v41 = vld [vmem:[#allocation2 + $0x60] sm:$0xff]
    %v42 = vld [vmem:[#allocation2 + $0x68] sm:$0xff]
    %v43 = vld [vmem:[#allocation2 + $0x70] sm:$0xff]
    %v44 = vld [vmem:[#allocation2 + $0x78] sm:$0xff]
    %v45 = vld [vmem:[#allocation2 + $0x80] sm:$0xff]
    %v46 = vld [vmem:[#allocation2 + $0x88] sm:$0xff]
    %v47 = vld [vmem:[#allocation2 + $0x90] sm:$0xff]
    %v48 = vld [vmem:[#allocation2 + $0x98] sm:$0xff]
    %v49 = vld [vmem:[#allocation2 + $0xa0] sm:$0xff]
    %v50 = vld [vmem:[#allocation2 + $0xa8] sm:$0xff]
    %v51 = vld [vmem:[#allocation2 + $0xb0] sm:$0xff]
    %v52 = vld [vmem:[#allocation2 + $0xb8] sm:$0xff]
    %v53 = vld [vmem:[#allocation2 + $0xc0] sm:$0xff]
    %v54 = vld [vmem:[#allocation2 + $0xc8] sm:$0xff]
    %v55 = vld [vmem:[#allocation2 + $0xd0] sm:$0xff]
    %v56 = vld [vmem:[#allocation2 + $0xd8] sm:$0xff]
    %v57 = vld [vmem:[#allocation2 + $0xe0] sm:$0xff]
    %v58 = vld [vmem:[#allocation2 + $0xe8] sm:$0xff]
    %v59 = vld [vmem:[#allocation2 + $0xf0] sm:$0xff]
    %v60 = vld [vmem:[#allocation2 + $0xf8] sm:$0xff]
    %v61 = vld [vmem:[#allocation2 + $0x100] sm:$0xff]
    %v62 = vld [vmem:[#allocation2 + $0x108] sm:$0xff]
    %v63 = vld [vmem:[#allocation2 + $0x110] sm:$0xff]
    %v64 = vld [vmem:[#allocation2 + $0x118] sm:$0xff]
    %v65 = vld [vmem:[#allocation2 + $0x120] sm:$0xff]
    %v66 = vld [vmem:[#allocation2 + $0x128] sm:$0xff]
    %v67 = vld [vmem:[#allocation2 + $0x130] sm:$0xff]
    %v68 = vld [vmem:[#allocation2 + $0x138] sm:$0xff]
    %v69 = vld [vmem:[#allocation2 + $0x140] sm:$0xff]
    %v70 = vld [vmem:[#allocation2 + $0x148] sm:$0xff]
    %v71 = vld [vmem:[#allocation2 + $0x150] sm:$0xff]
    %v72 = vld [vmem:[#allocation2 + $0x158] sm:$0xff]
    %v73 = vld [vmem:[#allocation2 + $0x160] sm:$0xff]
    %v74 = vld [vmem:[#allocation2 + $0x168] sm:$0xff]
    %v75 = vld [vmem:[#allocation2 + $0x170] sm:$0xff]
    %v76 = vld [vmem:[#allocation2 + $0x178] sm:$0xff]
    %v77 = vld [vmem:[#allocation2 + $0x180] sm:$0xff]
    %v78 = vld [vmem:[#allocation2 + $0x188] sm:$0xff]
    %v79 = vld [vmem:[#allocation2 + $0x190] sm:$0xff]
    %v80 = vld [vmem:[#allocation2 + $0x198] sm:$0xff]
    %v81 = vld [vmem:[#allocation2 + $0x1a0] sm:$0xff]
    %vm82 = vcmask 195584
    %v84 = vsel %vm82, %v25, 0
    %v87 = vsel %vm82, %v26, 0
    %89 = vmatprep.subr.mxu0 0.0
    %90 = vmatpush1.msra.mxu0 %v29
    %91 = vmatprep.subr.mxu0 0.0
    %92 = vmatpush1.msra.mxu0 %v30
    %93 = vmatprep.subr.mxu0 0.0
    %94 = vmatpush1.msra.mxu0 %v31
    %95 = vmatprep.subr.mxu0 0.0
    %96 = vmatpush1.msra.mxu0 0.0
    %97 = vmatprep.subr.mxu0 0.0
    %98 = vmatpush1.msra.mxu0 0.0
    %99 = vmatprep.subr.mxu0 0.0
    %100 = vmatpush1.msra.mxu0 0.0
    %101 = vmatprep.subr.mxu0 0.0
    %102 = vmatpush1.msra.mxu0 0.0
    %103 = vmatprep.subr.mxu0 0.0
    %104 = vmatpush1.msra.mxu0 0.0
    %105 = vmatprep.subr.mxu0 0.0
    %106 = vmatpush1.msra.mxu0 0.0
    %107 = vmatprep.subr.mxu0 0.0
    %108 = vmatpush1.msra.mxu0 0.0
    %109 = vmatprep.subr.mxu0 0.0
    %110 = vmatpush1.msra.mxu0 0.0
    %111 = vmatprep.subr.mxu0 0.0
    %112 = vmatpush1.msra.mxu0 0.0
    %113 = vmatprep.subr.mxu0 0.0
    %114 = vmatpush1.msra.mxu0 0.0
    %115 = vmatprep.subr.mxu0 0.0
    %116 = vmatpush1.msra.mxu0 0.0
    %117 = vmatprep.subr.mxu0 0.0
    %118 = vmatpush1.msra.mxu0 0.0
    %119 = vmatprep.subr.mxu0 0.0
    %120 = vmatpush1.msra.mxu0 0.0
    %121 = vmatprep.subr.mxu0 0.0
    %122 = vmatpush1.msra.mxu0 0.0
    %123 = vmatprep.subr.mxu0 0.0
    %124 = vmatpush1.msra.mxu0 0.0
    %125 = vmatprep.subr.mxu0 0.0
    %126 = vmatpush1.msra.mxu0 0.0
    %127 = vmatprep.subr.mxu0 0.0
    %128 = vmatpush1.msra.mxu0 0.0
    %129 = vmatprep.subr.mxu0 0.0
    %130 = vmatpush1.msra.mxu0 0.0
    %131 = vmatprep.subr.mxu0 0.0
    %132 = vmatpush1.msra.mxu0 0.0
    %133 = vmatprep.subr.mxu0 0.0
    %134 = vmatpush1.msra.mxu0 0.0
    %135 = vmatprep.subr.mxu0 0.0
    %136 = vmatpush1.msra.mxu0 0.0
    %137 = vmatprep.subr.mxu0 0.0
    %138 = vmatpush1.msra.mxu0 0.0
    %139 = vmatprep.subr.mxu0 0.0
    %140 = vmatpush1.msra.mxu0 0.0
    %141 = vmatprep.subr.mxu0 0.0
    %142 = vmatpush1.msra.mxu0 0.0
    %143 = vmatprep.subr.mxu0 0.0
    %144 = vmatpush1.msra.mxu0 0.0
    %145 = vmatprep.subr.mxu0 0.0
    %146 = vmatpush1.msra.mxu0 0.0
    %147 = vmatprep.subr.mxu0 0.0
    %148 = vmatpush1.msra.mxu0 0.0
    %149 = vmatprep.subr.mxu0 0.0
    %150 = vmatpush1.msra.mxu0 0.0
    %151 = vmatprep.subr.mxu0 0.0
    %152 = vmatpush1.msra.mxu0 0.0
    %153 = vmatprep.mubr.f32.mxu0 0.0
    %154 = vmatmul.mubr.f32.gmra.mrb[0].mxu0 %v84
    %v155 = vpop.f32.mrb[0].mxu0
    %v156 = vadd.f32 0.0, %v155
    %v157 = vpop.f32.mrb[0].mxu0
    %158 = vmatprep.mubr.f32.mxu0 0.0
    %159 = vmatmul.mubr.f32.gmra.mrb[0].mxu0 %v87
    %v160 = vpop.f32.mrb[0].mxu0
    %v161 = vadd.f32 0.0, %v160
    %v162 = vpop.f32.mrb[0].mxu0
    %163 = vdwg.mxu0
    %v164 = vlaneseq
    %v165 = vshrl.u32 %v164, 7
    %v166 = vsub.s32 0, %v165
    %v167 = vrot.slane %v80, %v166
    %vm168 = vcmask 261120
    %v170 = vsel %vm168, %v156, 0
    %v173 = vsel %vm168, %v161, 0
    %175 = vmatprep.subr.mxu0 0.0
    %176 = vmatpush1.msra.mxu0 %v32
    %177 = vmatprep.subr.mxu0 0.0
    %178 = vmatpush1.msra.mxu0 %v33
    %179 = vmatprep.subr.mxu0 0.0
    %180 = vmatpush1.msra.mxu0 %v34
    %181 = vmatprep.subr.mxu0 0.0
    %182 = vmatpush1.msra.mxu0 %v35
    %183 = vmatprep.subr.mxu0 0.0
    %184 = vmatpush1.msra.mxu0 0.0
    %185 = vmatprep.subr.mxu0 0.0
    %186 = vmatpush1.msra.mxu0 0.0
    %187 = vmatprep.subr.mxu0 0.0
    %188 = vmatpush1.msra.mxu0 0.0
    %189 = vmatprep.subr.mxu0 0.0
    %190 = vmatpush1.msra.mxu0 0.0
    %191 = vmatprep.subr.mxu0 0.0
    %192 = vmatpush1.msra.mxu0 0.0
    %193 = vmatprep.subr.mxu0 0.0
    %194 = vmatpush1.msra.mxu0 0.0
    %195 = vmatprep.subr.mxu0 0.0
    %196 = vmatpush1.msra.mxu0 0.0
    %197 = vmatprep.subr.mxu0 0.0
    %198 = vmatpush1.msra.mxu0 0.0
    %199 = vmatprep.subr.mxu0 0.0
    %200 = vmatpush1.msra.mxu0 0.0
    %201 = vmatprep.subr.mxu0 0.0
    %202 = vmatpush1.msra.mxu0 0.0
    %203 = vmatprep.subr.mxu0 0.0
    %204 = vmatpush1.msra.mxu0 0.0
    %205 = vmatprep.subr.mxu0 0.0
    %206 = vmatpush1.msra.mxu0 0.0
    %207 = vmatprep.subr.mxu0 0.0
    %208 = vmatpush1.msra.mxu0 0.0
    %209 = vmatprep.subr.mxu0 0.0
    %210 = vmatpush1.msra.mxu0 0.0
    %211 = vmatprep.subr.mxu0 0.0
    %212 = vmatpush1.msra.mxu0 0.0
    %213 = vmatprep.subr.mxu0 0.0
    %214 = vmatpush1.msra.mxu0 0.0
    %215 = vmatprep.subr.mxu0 0.0
    %216 = vmatpush1.msra.mxu0 0.0
    %217 = vmatprep.subr.mxu0 0.0
    %218 = vmatpush1.msra.mxu0 0.0
    %219 = vmatprep.subr.mxu0 0.0
    %220 = vmatpush1.msra.mxu0 0.0
    %221 = vmatprep.subr.mxu0 0.0
    %222 = vmatpush1.msra.mxu0 0.0
    %223 = vmatprep.subr.mxu0 0.0
    %224 = vmatpush1.msra.mxu0 0.0
    %225 = vmatprep.subr.mxu0 0.0
    %226 = vmatpush1.msra.mxu0 0.0
    %227 = vmatprep.subr.mxu0 0.0
    %228 = vmatpush1.msra.mxu0 0.0
    %229 = vmatprep.subr.mxu0 0.0
    %230 = vmatpush1.msra.mxu0 0.0
    %231 = vmatprep.subr.mxu0 0.0
    %232 = vmatpush1.msra.mxu0 0.0
    %233 = vmatprep.subr.mxu0 0.0
    %234 = vmatpush1.msra.mxu0 0.0
    %235 = vmatprep.subr.mxu0 0.0
    %236 = vmatpush1.msra.mxu0 0.0
    %237 = vmatprep.subr.mxu0 0.0
    %238 = vmatpush1.msra.mxu0 0.0
    %239 = vmatprep.mubr.f32.mxu0 0.0
    %240 = vmatmul.mubr.f32.gmra.mrb[0].mxu0 %v170
    %v241 = vpop.f32.mrb[0].mxu0
    %v242 = vadd.f32 %v167, %v241
    %v243 = vpop.f32.mrb[0].mxu0
    %244 = vmatprep.mubr.f32.mxu0 0.0
    %245 = vmatmul.mubr.f32.gmra.mrb[0].mxu0 %v173
    %v246 = vpop.f32.mrb[0].mxu0
    %v247 = vadd.f32 %v167, %v246
    %v248 = vpop.f32.mrb[0].mxu0
    %249 = vdwg.mxu0
    %252 = vrot.lane.b32.xlu0 %v242, 96
    %v253 = vpop.permute.xlu0 %252
    %254 = vrot.lane.b32.xlu0 %v247, 96
    %v255 = vpop.permute.xlu0 %254
    %vm258 = vcmask 130048
    %v260 = vsel %vm258, %v56, 0
    %v263 = vsel %vm258, %v57, 0
    %v266 = vsel %vm258, %v58, 0
    %v269 = vsel %vm258, %v59, 0
    %v272 = vsel %vm258, %v60, 0
    %v275 = vsel %vm258, %v61, 0
    %v278 = vsel %vm258, %v62, 0
    %v281 = vsel %vm258, %v63, 0
    %283 = vmatprep.subr.mxu0 0.0
    %284 = vmatpush1.msra.mxu0 %v253
    %285 = vmatprep.subr.mxu0 0.0
    %286 = vmatpush1.msra.mxu0 %v255
    %287 = vmatprep.subr.mxu0 0.0
    %288 = vmatpush1.msra.mxu0 0.0
    %289 = vmatprep.subr.mxu0 0.0
    %290 = vmatpush1.msra.mxu0 0.0
    %291 = vmatprep.subr.mxu0 0.0
    %292 = vmatpush1.msra.mxu0 0.0
    %293 = vmatprep.subr.mxu0 0.0
    %294 = vmatpush1.msra.mxu0 0.0
    %295 = vmatprep.subr.mxu0 0.0
    %296 = vmatpush1.msra.mxu0 0.0
    %297 = vmatprep.subr.mxu0 0.0
    %298 = vmatpush1.msra.mxu0 0.0
    %299 = vmatprep.subr.mxu0 0.0
    %300 = vmatpush1.msra.mxu0 0.0
    %301 = vmatprep.subr.mxu0 0.0
    %302 = vmatpush1.msra.mxu0 0.0
    %303 = vmatprep.subr.mxu0 0.0
    %304 = vmatpush1.msra.mxu0 0.0
    %305 = vmatprep.subr.mxu0 0.0
    %306 = vmatpush1.msra.mxu0 0.0
    %307 = vmatprep.subr.mxu0 0.0
    %308 = vmatpush1.msra.mxu0 0.0
    %309 = vmatprep.subr.mxu0 0.0
    %310 = vmatpush1.msra.mxu0 0.0
    %311 = vmatprep.subr.mxu0 0.0
    %312 = vmatpush1.msra.mxu0 0.0
    %313 = vmatprep.subr.mxu0 0.0
    %314 = vmatpush1.msra.mxu0 0.0
    %315 = vmatprep.subr.mxu0 0.0
    %316 = vmatpush1.msra.mxu0 0.0
    %317 = vmatprep.subr.mxu0 0.0
    %318 = vmatpush1.msra.mxu0 0.0
    %319 = vmatprep.subr.mxu0 0.0
    %320 = vmatpush1.msra.mxu0 0.0
    %321 = vmatprep.subr.mxu0 0.0
    %322 = vmatpush1.msra.mxu0 0.0
    %323 = vmatprep.subr.mxu0 0.0
    %324 = vmatpush1.msra.mxu0 0.0
    %325 = vmatprep.subr.mxu0 0.0
    %326 = vmatpush1.msra.mxu0 0.0
    %327 = vmatprep.subr.mxu0 0.0
    %328 = vmatpush1.msra.mxu0 0.0
    %329 = vmatprep.subr.mxu0 0.0
    %330 = vmatpush1.msra.mxu0 0.0
    %331 = vmatprep.subr.mxu0 0.0
    %332 = vmatpush1.msra.mxu0 0.0
    %333 = vmatprep.subr.mxu0 0.0
    %334 = vmatpush1.msra.mxu0 0.0
    %335 = vmatprep.subr.mxu0 0.0
    %336 = vmatpush1.msra.mxu0 0.0
    %337 = vmatprep.subr.mxu0 0.0
    %338 = vmatpush1.msra.mxu0 0.0
    %339 = vmatprep.subr.mxu0 0.0
    %340 = vmatpush1.msra.mxu0 0.0
    %341 = vmatprep.subr.mxu0 0.0
    %342 = vmatpush1.msra.mxu0 0.0
    %343 = vmatprep.subr.mxu0 0.0
    %344 = vmatpush1.msra.mxu0 0.0
    %345 = vmatprep.subr.mxu0 0.0
    %346 = vmatpush1.msra.mxu0 0.0
    %347 = vmatprep.mubr.f32.mxu0 0.0
    %348 = vmatmul.mubr.f32.gmra.mrb[0].mxu0 %v260
    %v349 = vpop.f32.mrb[0].mxu0
    %v350 = vadd.f32 0.0, %v349
    %v351 = vpop.f32.mrb[0].mxu0
    %352 = vmatprep.mubr.f32.mxu0 0.0
    %353 = vmatmul.mubr.f32.gmra.mrb[0].mxu0 %v263
    %v354 = vpop.f32.mrb[0].mxu0
    %v355 = vadd.f32 0.0, %v354
    %v356 = vpop.f32.mrb[0].mxu0
    %357 = vmatprep.mubr.f32.mxu0 0.0
    %358 = vmatmul.mubr.f32.gmra.mrb[0].mxu0 %v266
    %v359 = vpop.f32.mrb[0].mxu0
    %v360 = vadd.f32 0.0, %v359
    %v361 = vpop.f32.mrb[0].mxu0
    %362 = vmatprep.mubr.f32.mxu0 0.0
    %363 = vmatmul.mubr.f32.gmra.mrb[0].mxu0 %v269
    %v364 = vpop.f32.mrb[0].mxu0
    %v365 = vadd.f32 0.0, %v364
    %v366 = vpop.f32.mrb[0].mxu0
    %367 = vmatprep.mubr.f32.mxu0 0.0
    %368 = vmatmul.mubr.f32.gmra.mrb[0].mxu0 %v272
    %v369 = vpop.f32.mrb[0].mxu0
    %v370 = vadd.f32 0.0, %v369
    %v371 = vpop.f32.mrb[0].mxu0
    %372 = vmatprep.mubr.f32.mxu0 0.0
    %373 = vmatmul.mubr.f32.gmra.mrb[0].mxu0 %v275
    %v374 = vpop.f32.mrb[0].mxu0
    %v375 = vadd.f32 0.0, %v374
    %v376 = vpop.f32.mrb[0].mxu0
    %377 = vmatprep.mubr.f32.mxu0 0.0
    %378 = vmatmul.mubr.f32.gmra.mrb[0].mxu0 %v278
    %v379 = vpop.f32.mrb[0].mxu0
    %v380 = vadd.f32 0.0, %v379
    %v381 = vpop.f32.mrb[0].mxu0
    %382 = vmatprep.mubr.f32.mxu0 0.0
    %383 = vmatmul.mubr.f32.gmra.mrb[0].mxu0 %v281
    %v384 = vpop.f32.mrb[0].mxu0
    %v385 = vadd.f32 0.0, %v384
    %v386 = vpop.f32.mrb[0].mxu0
    %387 = vdwg.mxu0
    %v388 = vmul.f32 %v350, %v64
    %v389 = vmul.f32 %v355, %v65
    %v390 = vmul.f32 %v360, %v66
    %v391 = vmul.f32 %v365, %v67
    %v392 = vmul.f32 %v370, %v68
    %v393 = vmul.f32 %v375, %v69
    %v394 = vmul.f32 %v380, %v70
    %v395 = vmul.f32 %v385, %v71
    %396 = vrot.lane.b32.xlu0 %v242, 64
    %v397 = vpop.permute.xlu0 %396
    %398 = vrot.lane.b32.xlu0 %v247, 64
    %v399 = vpop.permute.xlu0 %398
    %402 = vmatprep.subr.mxu0 0.0
    %403 = vmatpush1.msra.mxu0 %v397
    %404 = vmatprep.subr.mxu0 0.0
    %405 = vmatpush1.msra.mxu0 %v399
    %406 = vmatprep.subr.mxu0 0.0
    %407 = vmatpush1.msra.mxu0 0.0
    %408 = vmatprep.subr.mxu0 0.0
    %409 = vmatpush1.msra.mxu0 0.0
    %410 = vmatprep.subr.mxu0 0.0
    %411 = vmatpush1.msra.mxu0 0.0
    %412 = vmatprep.subr.mxu0 0.0
    %413 = vmatpush1.msra.mxu0 0.0
    %414 = vmatprep.subr.mxu0 0.0
    %415 = vmatpush1.msra.mxu0 0.0
    %416 = vmatprep.subr.mxu0 0.0
    %417 = vmatpush1.msra.mxu0 0.0
    %418 = vmatprep.subr.mxu0 0.0
    %419 = vmatpush1.msra.mxu0 0.0
    %420 = vmatprep.subr.mxu0 0.0
    %421 = vmatpush1.msra.mxu0 0.0
    %422 = vmatprep.subr.mxu0 0.0
    %423 = vmatpush1.msra.mxu0 0.0
    %424 = vmatprep.subr.mxu0 0.0
    %425 = vmatpush1.msra.mxu0 0.0
    %426 = vmatprep.subr.mxu0 0.0
    %427 = vmatpush1.msra.mxu0 0.0
    %428 = vmatprep.subr.mxu0 0.0
    %429 = vmatpush1.msra.mxu0 0.0
    %430 = vmatprep.subr.mxu0 0.0
    %431 = vmatpush1.msra.mxu0 0.0
    %432 = vmatprep.subr.mxu0 0.0
    %433 = vmatpush1.msra.mxu0 0.0
    %434 = vmatprep.subr.mxu0 0.0
    %435 = vmatpush1.msra.mxu0 0.0
    %436 = vmatprep.subr.mxu0 0.0
    %437 = vmatpush1.msra.mxu0 0.0
    %438 = vmatprep.subr.mxu0 0.0
    %439 = vmatpush1.msra.mxu0 0.0
    %440 = vmatprep.subr.mxu0 0.0
    %441 = vmatpush1.msra.mxu0 0.0
    %442 = vmatprep.subr.mxu0 0.0
    %443 = vmatpush1.msra.mxu0 0.0
    %444 = vmatprep.subr.mxu0 0.0
    %445 = vmatpush1.msra.mxu0 0.0
    %446 = vmatprep.subr.mxu0 0.0
    %447 = vmatpush1.msra.mxu0 0.0
    %448 = vmatprep.subr.mxu0 0.0
    %449 = vmatpush1.msra.mxu0 0.0
    %450 = vmatprep.subr.mxu0 0.0
    %451 = vmatpush1.msra.mxu0 0.0
    %452 = vmatprep.subr.mxu0 0.0
    %453 = vmatpush1.msra.mxu0 0.0
    %454 = vmatprep.subr.mxu0 0.0
    %455 = vmatpush1.msra.mxu0 0.0
    %456 = vmatprep.subr.mxu0 0.0
    %457 = vmatpush1.msra.mxu0 0.0
    %458 = vmatprep.subr.mxu0 0.0
    %459 = vmatpush1.msra.mxu0 0.0
    %460 = vmatprep.subr.mxu0 0.0
    %461 = vmatpush1.msra.mxu0 0.0
    %462 = vmatprep.subr.mxu0 0.0
    %463 = vmatpush1.msra.mxu0 0.0
    %464 = vmatprep.subr.mxu0 0.0
    %465 = vmatpush1.msra.mxu0 0.0
    %466 = vmatprep.mubr.f32.mxu0 0.0
    %467 = vmatmul.mubr.f32.gmra.mrb[0].mxu0 %v260
    %v468 = vpop.f32.mrb[0].mxu0
    %v469 = vadd.f32 0.0, %v468
    %v470 = vpop.f32.mrb[0].mxu0
    %471 = vmatprep.mubr.f32.mxu0 0.0
    %472 = vmatmul.mubr.f32.gmra.mrb[0].mxu0 %v263
    %v473 = vpop.f32.mrb[0].mxu0
    %v474 = vadd.f32 0.0, %v473
    %v475 = vpop.f32.mrb[0].mxu0
    %476 = vmatprep.mubr.f32.mxu0 0.0
    %477 = vmatmul.mubr.f32.gmra.mrb[0].mxu0 %v266
    %v478 = vpop.f32.mrb[0].mxu0
    %v479 = vadd.f32 0.0, %v478
    %v480 = vpop.f32.mrb[0].mxu0
    %481 = vmatprep.mubr.f32.mxu0 0.0
    %482 = vmatmul.mubr.f32.gmra.mrb[0].mxu0 %v269
    %v483 = vpop.f32.mrb[0].mxu0
    %v484 = vadd.f32 0.0, %v483
    %v485 = vpop.f32.mrb[0].mxu0
    %486 = vmatprep.mubr.f32.mxu0 0.0
    %487 = vmatmul.mubr.f32.gmra.mrb[0].mxu0 %v272
    %v488 = vpop.f32.mrb[0].mxu0
    %v489 = vadd.f32 0.0, %v488
    %v490 = vpop.f32.mrb[0].mxu0
    %491 = vmatprep.mubr.f32.mxu0 0.0
    %492 = vmatmul.mubr.f32.gmra.mrb[0].mxu0 %v275
    %v493 = vpop.f32.mrb[0].mxu0
    %v494 = vadd.f32 0.0, %v493
    %v495 = vpop.f32.mrb[0].mxu0
    %496 = vmatprep.mubr.f32.mxu0 0.0
    %497 = vmatmul.mubr.f32.gmra.mrb[0].mxu0 %v278
    %v498 = vpop.f32.mrb[0].mxu0
    %v499 = vadd.f32 0.0, %v498
    %v500 = vpop.f32.mrb[0].mxu0
    %501 = vmatprep.mubr.f32.mxu0 0.0
    %502 = vmatmul.mubr.f32.gmra.mrb[0].mxu0 %v281
    %v503 = vpop.f32.mrb[0].mxu0
    %v504 = vadd.f32 0.0, %v503
    %v505 = vpop.f32.mrb[0].mxu0
    %506 = vdwg.mxu0
    %v507 = vmul.f32 %v469, %v64
    %v508 = vmul.f32 %v474, %v65
    %v509 = vmul.f32 %v479, %v66
    %v510 = vmul.f32 %v484, %v67
    %v511 = vmul.f32 %v489, %v68
    %v512 = vmul.f32 %v494, %v69
    %v513 = vmul.f32 %v499, %v70
    %v514 = vmul.f32 %v504, %v71
    %v515 = vsel %vm168, %v242, 0
    %v517 = vsel %vm168, %v247, 0
    %v520 = vsel %vm168, %v388, 0
    %v523 = vsel %vm168, %v389, 0
    %v526 = vsel %vm168, %v390, 0
    %v529 = vsel %vm168, %v391, 0
    %v532 = vsel %vm168, %v392, 0
    %v535 = vsel %vm168, %v393, 0
    %v538 = vsel %vm168, %v394, 0
    %v541 = vsel %vm168, %v395, 0
    %543 = vmatprep.subr.mxu0 0.0
    %544 = vmatpush1.xpose.msra.mxu0 %v520
    %545 = vmatprep.subr.mxu0 0.0
    %546 = vmatpush1.xpose.msra.mxu0 %v523
    %547 = vmatprep.subr.mxu0 0.0
    %548 = vmatpush1.xpose.msra.mxu0 %v526
    %549 = vmatprep.subr.mxu0 0.0
    %550 = vmatpush1.xpose.msra.mxu0 %v529
    %551 = vmatprep.subr.mxu0 0.0
    %552 = vmatpush1.xpose.msra.mxu0 %v532
    %553 = vmatprep.subr.mxu0 0.0
    %554 = vmatpush1.xpose.msra.mxu0 %v535
    %555 = vmatprep.subr.mxu0 0.0
    %556 = vmatpush1.xpose.msra.mxu0 %v538
    %557 = vmatprep.subr.mxu0 0.0
    %558 = vmatpush1.xpose.msra.mxu0 %v541
    %559 = vmatprep.subr.mxu0 0.0
    %560 = vmatpush1.xpose.msra.mxu0 0.0
    %561 = vmatprep.subr.mxu0 0.0
    %562 = vmatpush1.xpose.msra.mxu0 0.0
    %563 = vmatprep.subr.mxu0 0.0
    %564 = vmatpush1.xpose.msra.mxu0 0.0
    %565 = vmatprep.subr.mxu0 0.0
    %566 = vmatpush1.xpose.msra.mxu0 0.0
    %567 = vmatprep.subr.mxu0 0.0
    %568 = vmatpush1.xpose.msra.mxu0 0.0
    %569 = vmatprep.subr.mxu0 0.0
    %570 = vmatpush1.xpose.msra.mxu0 0.0
    %571 = vmatprep.subr.mxu0 0.0
    %572 = vmatpush1.xpose.msra.mxu0 0.0
    %573 = vmatprep.subr.mxu0 0.0
    %574 = vmatpush1.xpose.msra.mxu0 0.0
    %575 = vmatprep.subr.mxu0 0.0
    %576 = vmatpush1.xpose.msra.mxu0 0.0
    %577 = vmatprep.subr.mxu0 0.0
    %578 = vmatpush1.xpose.msra.mxu0 0.0
    %579 = vmatprep.subr.mxu0 0.0
    %580 = vmatpush1.xpose.msra.mxu0 0.0
    %581 = vmatprep.subr.mxu0 0.0
    %582 = vmatpush1.xpose.msra.mxu0 0.0
    %583 = vmatprep.subr.mxu0 0.0
    %584 = vmatpush1.xpose.msra.mxu0 0.0
    %585 = vmatprep.subr.mxu0 0.0
    %586 = vmatpush1.xpose.msra.mxu0 0.0
    %587 = vmatprep.subr.mxu0 0.0
    %588 = vmatpush1.xpose.msra.mxu0 0.0
    %589 = vmatprep.subr.mxu0 0.0
    %590 = vmatpush1.xpose.msra.mxu0 0.0
    %591 = vmatprep.subr.mxu0 0.0
    %592 = vmatpush1.xpose.msra.mxu0 0.0
    %593 = vmatprep.subr.mxu0 0.0
    %594 = vmatpush1.xpose.msra.mxu0 0.0
    %595 = vmatprep.subr.mxu0 0.0
    %596 = vmatpush1.xpose.msra.mxu0 0.0
    %597 = vmatprep.subr.mxu0 0.0
    %598 = vmatpush1.xpose.msra.mxu0 0.0
    %599 = vmatprep.subr.mxu0 0.0
    %600 = vmatpush1.xpose.msra.mxu0 0.0
    %601 = vmatprep.subr.mxu0 0.0
    %602 = vmatpush1.xpose.msra.mxu0 0.0
    %603 = vmatprep.subr.mxu0 0.0
    %604 = vmatpush1.xpose.msra.mxu0 0.0
    %605 = vmatprep.subr.mxu0 0.0
    %606 = vmatpush1.xpose.msra.mxu0 0.0
    %607 = vmatprep.mubr.f32.mxu0 0.0
    %608 = vmatmul.mubr.f32.gmra.mrb[0].mxu0 %v515
    %v609 = vpop.f32.mrb[0].mxu0
    %v610 = vadd.f32 0.0, %v609
    %v611 = vpop.f32.mrb[0].mxu0
    %612 = vmatprep.mubr.f32.mxu0 0.0
    %613 = vmatmul.mubr.f32.gmra.mrb[0].mxu0 %v517
    %v614 = vpop.f32.mrb[0].mxu0
    %v615 = vadd.f32 0.0, %v614
    %v616 = vpop.f32.mrb[0].mxu0
    %617 = vdwg.mxu0
    %v618 = vmul.f32 %v610, 0.35355338
    %v619 = vmul.f32 %v615, 0.35355338
    %v620 = vadd.f32 %v618, %v27
    %v621 = vadd.f32 %v619, %v28
    %vm622 = vcmask 523264
    %v623 = vsel %vm622, %v620, -inf
    %624 = vmax.xlane.f32.xlu0 %v623
    %v625 = vpop.xlane.xlu0 %624
    %v626 = vsel %vm622, %v621, -inf
    %627 = vmax.xlane.f32.xlu0 %v626
    %v628 = vpop.xlane.xlu0 %627
    %v629 = vsub.f32 %v620, %v625
    %v630 = vsub.f32 %v621, %v628
    %v631 = vmul.f32 %v629, 1.442695
    %v632 = vpow.pop %v631
    %v633 = vmul.f32 %v630, 1.442695
    %v634 = vpow.pop %v633
    %v636 = vsel %vm622, %v632, 0
    %v639 = vsel %vm622, %v634, 0
    %641 = vmatprep.subr.mxu0 0.0
    %642 = vmatpush1.msra.mxu0 %v72
    %643 = vmatprep.subr.mxu0 0.0
    %644 = vmatpush1.msra.mxu0 %v73
    %645 = vmatprep.subr.mxu0 0.0
    %646 = vmatpush1.msra.mxu0 %v74
    %647 = vmatprep.subr.mxu0 0.0
    %648 = vmatpush1.msra.mxu0 %v75
    %649 = vmatprep.subr.mxu0 0.0
    %650 = vmatpush1.msra.mxu0 %v76
    %651 = vmatprep.subr.mxu0 0.0
    %652 = vmatpush1.msra.mxu0 %v77
    %653 = vmatprep.subr.mxu0 0.0
    %654 = vmatpush1.msra.mxu0 %v78
    %655 = vmatprep.subr.mxu0 0.0
    %656 = vmatpush1.msra.mxu0 %v79
    %657 = vmatprep.subr.mxu0 0.0
    %658 = vmatpush1.msra.mxu0 0.0
    %659 = vmatprep.subr.mxu0 0.0
    %660 = vmatpush1.msra.mxu0 0.0
    %661 = vmatprep.subr.mxu0 0.0
    %662 = vmatpush1.msra.mxu0 0.0
    %663 = vmatprep.subr.mxu0 0.0
    %664 = vmatpush1.msra.mxu0 0.0
    %665 = vmatprep.subr.mxu0 0.0
    %666 = vmatpush1.msra.mxu0 0.0
    %667 = vmatprep.subr.mxu0 0.0
    %668 = vmatpush1.msra.mxu0 0.0
    %669 = vmatprep.subr.mxu0 0.0
    %670 = vmatpush1.msra.mxu0 0.0
    %671 = vmatprep.subr.mxu0 0.0
    %672 = vmatpush1.msra.mxu0 0.0
    %673 = vmatprep.subr.mxu0 0.0
    %674 = vmatpush1.msra.mxu0 0.0
    %675 = vmatprep.subr.mxu0 0.0
    %676 = vmatpush1.msra.mxu0 0.0
    %677 = vmatprep.subr.mxu0 0.0
    %678 = vmatpush1.msra.mxu0 0.0
    %679 = vmatprep.subr.mxu0 0.0
    %680 = vmatpush1.msra.mxu0 0.0
    %681 = vmatprep.subr.mxu0 0.0
    %682 = vmatpush1.msra.mxu0 0.0
    %683 = vmatprep.subr.mxu0 0.0
    %684 = vmatpush1.msra.mxu0 0.0
    %685 = vmatprep.subr.mxu0 0.0
    %686 = vmatpush1.msra.mxu0 0.0
    %687 = vmatprep.subr.mxu0 0.0
    %688 = vmatpush1.msra.mxu0 0.0
    %689 = vmatprep.subr.mxu0 0.0
    %690 = vmatpush1.msra.mxu0 0.0
    %691 = vmatprep.subr.mxu0 0.0
    %692 = vmatpush1.msra.mxu0 0.0
    %693 = vmatprep.subr.mxu0 0.0
    %694 = vmatpush1.msra.mxu0 0.0
    %695 = vmatprep.subr.mxu0 0.0
    %696 = vmatpush1.msra.mxu0 0.0
    %697 = vmatprep.subr.mxu0 0.0
    %698 = vmatpush1.msra.mxu0 0.0
    %699 = vmatprep.subr.mxu0 0.0
    %700 = vmatpush1.msra.mxu0 0.0
    %701 = vmatprep.subr.mxu0 0.0
    %702 = vmatpush1.msra.mxu0 0.0
    %703 = vmatprep.subr.mxu0 0.0
    %704 = vmatpush1.msra.mxu0 0.0
    %705 = vmatprep.mubr.f32.mxu0 0.0
    %706 = vmatmul.mubr.f32.gmra.mrb[0].mxu0 %v636
    %v707 = vpop.f32.mrb[0].mxu0
    %v708 = vadd.f32 1e-20, %v707
    %v709 = vpop.f32.mrb[0].mxu0
    %710 = vmatprep.mubr.f32.mxu0 0.0
    %711 = vmatmul.mubr.f32.gmra.mrb[0].mxu0 %v639
    %v712 = vpop.f32.mrb[0].mxu0
    %v713 = vadd.f32 1e-20, %v712
    %v714 = vpop.f32.mrb[0].mxu0
    %715 = vdwg.mxu0
    %v716 = vrcp.pop %v708
    %v717 = vmul.f32 %v632, %v716
    %v718 = vrcp.pop %v713
    %v719 = vmul.f32 %v634, %v718
    %v721 = vsel %vm622, %v717, 0
    %v724 = vsel %vm622, %v719, 0
    %726 = vmatprep.subr.mxu0 0.0
    %727 = vmatpush1.msra.mxu0 %v507
    %728 = vmatprep.subr.mxu0 0.0
    %729 = vmatpush1.msra.mxu0 %v508
    %730 = vmatprep.subr.mxu0 0.0
    %731 = vmatpush1.msra.mxu0 %v509
    %732 = vmatprep.subr.mxu0 0.0
    %733 = vmatpush1.msra.mxu0 %v510
    %734 = vmatprep.subr.mxu0 0.0
    %735 = vmatpush1.msra.mxu0 %v511
    %736 = vmatprep.subr.mxu0 0.0
    %737 = vmatpush1.msra.mxu0 %v512
    %738 = vmatprep.subr.mxu0 0.0
    %739 = vmatpush1.msra.mxu0 %v513
    %740 = vmatprep.subr.mxu0 0.0
    %741 = vmatpush1.msra.mxu0 %v514
    %742 = vmatprep.subr.mxu0 0.0
    %743 = vmatpush1.msra.mxu0 0.0
    %744 = vmatprep.subr.mxu0 0.0
    %745 = vmatpush1.msra.mxu0 0.0
    %746 = vmatprep.subr.mxu0 0.0
    %747 = vmatpush1.msra.mxu0 0.0
    %748 = vmatprep.subr.mxu0 0.0
    %749 = vmatpush1.msra.mxu0 0.0
    %750 = vmatprep.subr.mxu0 0.0
    %751 = vmatpush1.msra.mxu0 0.0
    %752 = vmatprep.subr.mxu0 0.0
    %753 = vmatpush1.msra.mxu0 0.0
    %754 = vmatprep.subr.mxu0 0.0
    %755 = vmatpush1.msra.mxu0 0.0
    %756 = vmatprep.subr.mxu0 0.0
    %757 = vmatpush1.msra.mxu0 0.0
    %758 = vmatprep.subr.mxu0 0.0
    %759 = vmatpush1.msra.mxu0 0.0
    %760 = vmatprep.subr.mxu0 0.0
    %761 = vmatpush1.msra.mxu0 0.0
    %762 = vmatprep.subr.mxu0 0.0
    %763 = vmatpush1.msra.mxu0 0.0
    %764 = vmatprep.subr.mxu0 0.0
    %765 = vmatpush1.msra.mxu0 0.0
    %766 = vmatprep.subr.mxu0 0.0
    %767 = vmatpush1.msra.mxu0 0.0
    %768 = vmatprep.subr.mxu0 0.0
    %769 = vmatpush1.msra.mxu0 0.0
    %770 = vmatprep.subr.mxu0 0.0
    %771 = vmatpush1.msra.mxu0 0.0
    %772 = vmatprep.subr.mxu0 0.0
    %773 = vmatpush1.msra.mxu0 0.0
    %774 = vmatprep.subr.mxu0 0.0
    %775 = vmatpush1.msra.mxu0 0.0
    %776 = vmatprep.subr.mxu0 0.0
    %777 = vmatpush1.msra.mxu0 0.0
    %778 = vmatprep.subr.mxu0 0.0
    %779 = vmatpush1.msra.mxu0 0.0
    %780 = vmatprep.subr.mxu0 0.0
    %781 = vmatpush1.msra.mxu0 0.0
    %782 = vmatprep.subr.mxu0 0.0
    %783 = vmatpush1.msra.mxu0 0.0
    %784 = vmatprep.subr.mxu0 0.0
    %785 = vmatpush1.msra.mxu0 0.0
    %786 = vmatprep.subr.mxu0 0.0
    %787 = vmatpush1.msra.mxu0 0.0
    %788 = vmatprep.subr.mxu0 0.0
    %789 = vmatpush1.msra.mxu0 0.0
    %790 = vmatprep.mubr.f32.mxu0 0.0
    %791 = vmatmul.mubr.f32.gmra.mrb[0].mxu0 %v721
    %v792 = vpop.f32.mrb[0].mxu0
    %v793 = vadd.f32 0.0, %v792
    %v794 = vpop.f32.mrb[0].mxu0
    %795 = vmatprep.mubr.f32.mxu0 0.0
    %796 = vmatmul.mubr.f32.gmra.mrb[0].mxu0 %v724
    %v797 = vpop.f32.mrb[0].mxu0
    %v798 = vadd.f32 0.0, %v797
    %v799 = vpop.f32.mrb[0].mxu0
    %800 = vdwg.mxu0
    %v801 = vlaneseq
    %v802 = vshrl.u32 %v801, 7
    %v803 = vsub.s32 1, %v802
    %v804 = vrot.slane %v80, %v803
    %v806 = vsel %vm168, %v793, 0
    %v809 = vsel %vm168, %v798, 0
    %811 = vmatprep.subr.mxu0 0.0
    %812 = vmatpush1.msra.mxu0 %v36
    %813 = vmatprep.subr.mxu0 0.0
    %814 = vmatpush1.msra.mxu0 %v37
    %815 = vmatprep.subr.mxu0 0.0
    %816 = vmatpush1.msra.mxu0 %v38
    %817 = vmatprep.subr.mxu0 0.0
    %818 = vmatpush1.msra.mxu0 %v39
    %819 = vmatprep.subr.mxu0 0.0
    %820 = vmatpush1.msra.mxu0 0.0
    %821 = vmatprep.subr.mxu0 0.0
    %822 = vmatpush1.msra.mxu0 0.0
    %823 = vmatprep.subr.mxu0 0.0
    %824 = vmatpush1.msra.mxu0 0.0
    %825 = vmatprep.subr.mxu0 0.0
    %826 = vmatpush1.msra.mxu0 0.0
    %827 = vmatprep.subr.mxu0 0.0
    %828 = vmatpush1.msra.mxu0 0.0
    %829 = vmatprep.subr.mxu0 0.0
    %830 = vmatpush1.msra.mxu0 0.0
    %831 = vmatprep.subr.mxu0 0.0
    %832 = vmatpush1.msra.mxu0 0.0
    %833 = vmatprep.subr.mxu0 0.0
    %834 = vmatpush1.msra.mxu0 0.0
    %835 = vmatprep.subr.mxu0 0.0
    %836 = vmatpush1.msra.mxu0 0.0
    %837 = vmatprep.subr.mxu0 0.0
    %838 = vmatpush1.msra.mxu0 0.0
    %839 = vmatprep.subr.mxu0 0.0
    %840 = vmatpush1.msra.mxu0 0.0
    %841 = vmatprep.subr.mxu0 0.0
    %842 = vmatpush1.msra.mxu0 0.0
    %843 = vmatprep.subr.mxu0 0.0
    %844 = vmatpush1.msra.mxu0 0.0
    %845 = vmatprep.subr.mxu0 0.0
    %846 = vmatpush1.msra.mxu0 0.0
    %847 = vmatprep.subr.mxu0 0.0
    %848 = vmatpush1.msra.mxu0 0.0
    %849 = vmatprep.subr.mxu0 0.0
    %850 = vmatpush1.msra.mxu0 0.0
    %851 = vmatprep.subr.mxu0 0.0
    %852 = vmatpush1.msra.mxu0 0.0
    %853 = vmatprep.subr.mxu0 0.0
    %854 = vmatpush1.msra.mxu0 0.0
    %855 = vmatprep.subr.mxu0 0.0
    %856 = vmatpush1.msra.mxu0 0.0
    %857 = vmatprep.subr.mxu0 0.0
    %858 = vmatpush1.msra.mxu0 0.0
    %859 = vmatprep.subr.mxu0 0.0
    %860 = vmatpush1.msra.mxu0 0.0
    %861 = vmatprep.subr.mxu0 0.0
    %862 = vmatpush1.msra.mxu0 0.0
    %863 = vmatprep.subr.mxu0 0.0
    %864 = vmatpush1.msra.mxu0 0.0
    %865 = vmatprep.subr.mxu0 0.0
    %866 = vmatpush1.msra.mxu0 0.0
    %867 = vmatprep.subr.mxu0 0.0
    %868 = vmatpush1.msra.mxu0 0.0
    %869 = vmatprep.subr.mxu0 0.0
    %870 = vmatpush1.msra.mxu0 0.0
    %871 = vmatprep.subr.mxu0 0.0
    %872 = vmatpush1.msra.mxu0 0.0
    %873 = vmatprep.subr.mxu0 0.0
    %874 = vmatpush1.msra.mxu0 0.0
    %875 = vmatprep.mubr.f32.mxu0 0.0
    %876 = vmatmul.mubr.f32.gmra.mrb[0].mxu0 %v806
    %v877 = vpop.f32.mrb[0].mxu0
    %v878 = vadd.f32 %v804, %v877
    %v879 = vpop.f32.mrb[0].mxu0
    %880 = vmatprep.mubr.f32.mxu0 0.0
    %881 = vmatmul.mubr.f32.gmra.mrb[0].mxu0 %v809
    %v882 = vpop.f32.mrb[0].mxu0
    %v883 = vadd.f32 %v804, %v882
    %v884 = vpop.f32.mrb[0].mxu0
    %885 = vdwg.mxu0
    %v886 = vadd.f32 %v156, %v878
    %v887 = vadd.f32 %v161, %v883
    %v888 = vsel %vm168, %v886, 0.0
    %889 = vadd.xlane.f32.xlu0 %v888
    %v890 = vpop.xlane.xlu0 %889
    %v891 = vsel %vm168, %v887, 0.0
    %892 = vadd.xlane.f32.xlu0 %v891
    %v893 = vpop.xlane.xlu0 %892
    %v894 = vrcp.pop 32.0
    %v895 = vmul.f32 %v890, %v894
    %v896 = vmul.f32 %v893, %v894
    %v897 = vsub.f32 %v886, %v895
    %v898 = vsub.f32 %v887, %v896
    %v899 = vmul.f32 %v897, %v897
    %v900 = vmul.f32 %v898, %v898
    %v901 = vsel %vm168, %v899, 0.0
    %902 = vadd.xlane.f32.xlu0 %v901
    %v903 = vpop.xlane.xlu0 %902
    %v904 = vsel %vm168, %v900, 0.0
    %905 = vadd.xlane.f32.xlu0 %v904
    %v906 = vpop.xlane.xlu0 %905
    %v907 = vmul.f32 %v903, %v894
    %v908 = vmul.f32 %v906, %v894
    %v909 = vadd.f32 %v907, 1e-12
    %v910 = vadd.f32 %v908, 1e-12
    %v911 = vrsqrt.pop %v909
    %v912 = vrsqrt.pop %v910
    %v913 = vmul.f32 %v897, %v911
    %v914 = vmul.f32 %v898, %v912
    %v915 = vlaneseq
    %v916 = vshrl.u32 %v915, 7
    %v917 = vsub.s32 2, %v916
    %v918 = vrot.slane %v80, %v917
    %v919 = vmul.f32 %v913, %v918
    %v920 = vmul.f32 %v914, %v918
    %v921 = vlaneseq
    %v922 = vshrl.u32 %v921, 7
    %v923 = vsub.s32 3, %v922
    %v924 = vrot.slane %v80, %v923
    %v925 = vadd.f32 %v919, %v924
    %v926 = vadd.f32 %v920, %v924
    %v927 = vlaneseq
    %v928 = vshrl.u32 %v927, 7
    %v929 = vsub.s32 4, %v928
    %v930 = vrot.slane %v80, %v929
    %v932 = vsel %vm168, %v925, 0
    %v935 = vsel %vm168, %v926, 0
    %937 = vmatprep.subr.mxu0 0.0
    %938 = vmatpush1.msra.mxu0 %v44
    %939 = vmatprep.subr.mxu0 0.0
    %940 = vmatpush1.msra.mxu0 %v45
    %941 = vmatprep.subr.mxu0 0.0
    %942 = vmatpush1.msra.mxu0 %v46
    %943 = vmatprep.subr.mxu0 0.0
    %944 = vmatpush1.msra.mxu0 %v47
    %945 = vmatprep.subr.mxu0 0.0
    %946 = vmatpush1.msra.mxu0 0.0
    %947 = vmatprep.subr.mxu0 0.0
    %948 = vmatpush1.msra.mxu0 0.0
    %949 = vmatprep.subr.mxu0 0.0
    %950 = vmatpush1.msra.mxu0 0.0
    %951 = vmatprep.subr.mxu0 0.0
    %952 = vmatpush1.msra.mxu0 0.0
    %953 = vmatprep.subr.mxu0 0.0
    %954 = vmatpush1.msra.mxu0 0.0
    %955 = vmatprep.subr.mxu0 0.0
    %956 = vmatpush1.msra.mxu0 0.0
    %957 = vmatprep.subr.mxu0 0.0
    %958 = vmatpush1.msra.mxu0 0.0
    %959 = vmatprep.subr.mxu0 0.0
    %960 = vmatpush1.msra.mxu0 0.0
    %961 = vmatprep.subr.mxu0 0.0
    %962 = vmatpush1.msra.mxu0 0.0
    %963 = vmatprep.subr.mxu0 0.0
    %964 = vmatpush1.msra.mxu0 0.0
    %965 = vmatprep.subr.mxu0 0.0
    %966 = vmatpush1.msra.mxu0 0.0
    %967 = vmatprep.subr.mxu0 0.0
    %968 = vmatpush1.msra.mxu0 0.0
    %969 = vmatprep.subr.mxu0 0.0
    %970 = vmatpush1.msra.mxu0 0.0
    %971 = vmatprep.subr.mxu0 0.0
    %972 = vmatpush1.msra.mxu0 0.0
    %973 = vmatprep.subr.mxu0 0.0
    %974 = vmatpush1.msra.mxu0 0.0
    %975 = vmatprep.subr.mxu0 0.0
    %976 = vmatpush1.msra.mxu0 0.0
    %977 = vmatprep.subr.mxu0 0.0
    %978 = vmatpush1.msra.mxu0 0.0
    %979 = vmatprep.subr.mxu0 0.0
    %980 = vmatpush1.msra.mxu0 0.0
    %981 = vmatprep.subr.mxu0 0.0
    %982 = vmatpush1.msra.mxu0 0.0
    %983 = vmatprep.subr.mxu0 0.0
    %984 = vmatpush1.msra.mxu0 0.0
    %985 = vmatprep.subr.mxu0 0.0
    %986 = vmatpush1.msra.mxu0 0.0
    %987 = vmatprep.subr.mxu0 0.0
    %988 = vmatpush1.msra.mxu0 0.0
    %989 = vmatprep.subr.mxu0 0.0
    %990 = vmatpush1.msra.mxu0 0.0
    %991 = vmatprep.subr.mxu0 0.0
    %992 = vmatpush1.msra.mxu0 0.0
    %993 = vmatprep.subr.mxu0 0.0
    %994 = vmatpush1.msra.mxu0 0.0
    %995 = vmatprep.subr.mxu0 0.0
    %996 = vmatpush1.msra.mxu0 0.0
    %997 = vmatprep.subr.mxu0 0.0
    %998 = vmatpush1.msra.mxu0 0.0
    %999 = vmatprep.subr.mxu0 0.0
    %1000 = vmatpush1.msra.mxu0 0.0
    %1001 = vmatprep.mubr.f32.mxu0 0.0
    %1002 = vmatmul.mubr.f32.gmra.mrb[0].mxu0 %v932
    %v1003 = vpop.f32.mrb[0].mxu0
    %v1004 = vadd.f32 %v930, %v1003
    %v1005 = vpop.f32.mrb[0].mxu0
    %1006 = vmatprep.mubr.f32.mxu0 0.0
    %1007 = vmatmul.mubr.f32.gmra.mrb[0].mxu0 %v935
    %v1008 = vpop.f32.mrb[0].mxu0
    %v1009 = vadd.f32 %v930, %v1008
    %v1010 = vpop.f32.mrb[0].mxu0
    %1011 = vdwg.mxu0
    %v1012 = vmul.f32 %v1004, %v1004
    %v1013 = vmul.f32 %v1009, %v1009
    %v1014 = vmul.f32 %v1004, %v1012
    %v1015 = vmul.f32 %v1009, %v1013
    %v1016 = vmul.f32 %v1014, 0.044715
    %v1017 = vmul.f32 %v1015, 0.044715
    %v1018 = vadd.f32 %v1004, %v1016
    %v1019 = vadd.f32 %v1009, %v1017
    %v1020 = vmul.f32 %v1018, 0.7978846
    %v1021 = vmul.f32 %v1019, 0.7978846
    %v1022 = vtanh.pop %v1020
    %v1023 = vtanh.pop %v1021
    %v1024 = vadd.f32 %v1022, 1.0
    %v1025 = vadd.f32 %v1023, 1.0
    %v1026 = vmul.f32 %v1024, 0.5
    %v1027 = vmul.f32 %v1025, 0.5
    %v1028 = vmul.f32 %v1004, %v1026
    %v1029 = vmul.f32 %v1009, %v1027
    %v1030 = vlaneseq
    %v1031 = vshrl.u32 %v1030, 7
    %v1032 = vsub.s32 5, %v1031
    %v1033 = vrot.slane %v80, %v1032
    %v1035 = vsel %vm622, %v1028, 0
    %v1038 = vsel %vm622, %v1029, 0
    %1040 = vmatprep.subr.mxu0 0.0
    %1041 = vmatpush1.msra.mxu0 %v48
    %1042 = vmatprep.subr.mxu0 0.0
    %1043 = vmatpush1.msra.mxu0 %v49
    %1044 = vmatprep.subr.mxu0 0.0
    %1045 = vmatpush1.msra.mxu0 %v50
    %1046 = vmatprep.subr.mxu0 0.0
    %1047 = vmatpush1.msra.mxu0 %v51
    %1048 = vmatprep.subr.mxu0 0.0
    %1049 = vmatpush1.msra.mxu0 %v52
    %1050 = vmatprep.subr.mxu0 0.0
    %1051 = vmatpush1.msra.mxu0 %v53
    %1052 = vmatprep.subr.mxu0 0.0
    %1053 = vmatpush1.msra.mxu0 %v54
    %1054 = vmatprep.subr.mxu0 0.0
    %1055 = vmatpush1.msra.mxu0 %v55
    %1056 = vmatprep.subr.mxu0 0.0
    %1057 = vmatpush1.msra.mxu0 0.0
    %1058 = vmatprep.subr.mxu0 0.0
    %1059 = vmatpush1.msra.mxu0 0.0
    %1060 = vmatprep.subr.mxu0 0.0
    %1061 = vmatpush1.msra.mxu0 0.0
    %1062 = vmatprep.subr.mxu0 0.0
    %1063 = vmatpush1.msra.mxu0 0.0
    %1064 = vmatprep.subr.mxu0 0.0
    %1065 = vmatpush1.msra.mxu0 0.0
    %1066 = vmatprep.subr.mxu0 0.0
    %1067 = vmatpush1.msra.mxu0 0.0
    %1068 = vmatprep.subr.mxu0 0.0
    %1069 = vmatpush1.msra.mxu0 0.0
    %1070 = vmatprep.subr.mxu0 0.0
    %1071 = vmatpush1.msra.mxu0 0.0
    %1072 = vmatprep.subr.mxu0 0.0
    %1073 = vmatpush1.msra.mxu0 0.0
    %1074 = vmatprep.subr.mxu0 0.0
    %1075 = vmatpush1.msra.mxu0 0.0
    %1076 = vmatprep.subr.mxu0 0.0
    %1077 = vmatpush1.msra.mxu0 0.0
    %1078 = vmatprep.subr.mxu0 0.0
    %1079 = vmatpush1.msra.mxu0 0.0
    %1080 = vmatprep.subr.mxu0 0.0
    %1081 = vmatpush1.msra.mxu0 0.0
    %1082 = vmatprep.subr.mxu0 0.0
    %1083 = vmatpush1.msra.mxu0 0.0
    %1084 = vmatprep.subr.mxu0 0.0
    %1085 = vmatpush1.msra.mxu0 0.0
    %1086 = vmatprep.subr.mxu0 0.0
    %1087 = vmatpush1.msra.mxu0 0.0
    %1088 = vmatprep.subr.mxu0 0.0
    %1089 = vmatpush1.msra.mxu0 0.0
    %1090 = vmatprep.subr.mxu0 0.0
    %1091 = vmatpush1.msra.mxu0 0.0
    %1092 = vmatprep.subr.mxu0 0.0
    %1093 = vmatpush1.msra.mxu0 0.0
    %1094 = vmatprep.subr.mxu0 0.0
    %1095 = vmatpush1.msra.mxu0 0.0
    %1096 = vmatprep.subr.mxu0 0.0
    %1097 = vmatpush1.msra.mxu0 0.0
    %1098 = vmatprep.subr.mxu0 0.0
    %1099 = vmatpush1.msra.mxu0 0.0
    %1100 = vmatprep.subr.mxu0 0.0
    %1101 = vmatpush1.msra.mxu0 0.0
    %1102 = vmatprep.subr.mxu0 0.0
    %1103 = vmatpush1.msra.mxu0 0.0
    %1104 = vmatprep.mubr.f32.mxu0 0.0
    %1105 = vmatmul.mubr.f32.gmra.mrb[0].mxu0 %v1035
    %v1106 = vpop.f32.mrb[0].mxu0
    %v1107 = vadd.f32 %v1033, %v1106
    %v1108 = vpop.f32.mrb[0].mxu0
    %1109 = vmatprep.mubr.f32.mxu0 0.0
    %1110 = vmatmul.mubr.f32.gmra.mrb[0].mxu0 %v1038
    %v1111 = vpop.f32.mrb[0].mxu0
    %v1112 = vadd.f32 %v1033, %v1111
    %v1113 = vpop.f32.mrb[0].mxu0
    %1114 = vdwg.mxu0
    %v1115 = vadd.f32 %v925, %v1107
    %v1116 = vadd.f32 %v926, %v1112
    %v1117 = vsel %vm168, %v1115, 0.0
    %1118 = vadd.xlane.f32.xlu0 %v1117
    %v1119 = vpop.xlane.xlu0 %1118
    %v1120 = vsel %vm168, %v1116, 0.0
    %1121 = vadd.xlane.f32.xlu0 %v1120
    %v1122 = vpop.xlane.xlu0 %1121
    %v1123 = vmul.f32 %v1119, %v894
    %v1124 = vmul.f32 %v1122, %v894
    %v1125 = vsub.f32 %v1115, %v1123
    %v1126 = vsub.f32 %v1116, %v1124
    %v1127 = vmul.f32 %v1125, %v1125
    %v1128 = vmul.f32 %v1126, %v1126
    %v1129 = vsel %vm168, %v1127, 0.0
    %1130 = vadd.xlane.f32.xlu0 %v1129
    %v1131 = vpop.xlane.xlu0 %1130
    %v1132 = vsel %vm168, %v1128, 0.0
    %1133 = vadd.xlane.f32.xlu0 %v1132
    %v1134 = vpop.xlane.xlu0 %1133
    %v1135 = vmul.f32 %v1131, %v894
    %v1136 = vmul.f32 %v1134, %v894
    %v1137 = vadd.f32 %v1135, 1e-12
    %v1138 = vadd.f32 %v1136, 1e-12
    %v1139 = vrsqrt.pop %v1137
    %v1140 = vrsqrt.pop %v1138
    %v1141 = vmul.f32 %v1125, %v1139
    %v1142 = vmul.f32 %v1126, %v1140
    %v1143 = vlaneseq
    %v1144 = vshrl.u32 %v1143, 7
    %v1145 = vsub.s32 6, %v1144
    %v1146 = vrot.slane %v80, %v1145
    %v1147 = vmul.f32 %v1141, %v1146
    %v1148 = vmul.f32 %v1142, %v1146
    %v1149 = vlaneseq
    %v1150 = vshrl.u32 %v1149, 7
    %v1151 = vsub.s32 7, %v1150
    %v1152 = vrot.slane %v80, %v1151
    %v1153 = vadd.f32 %v1147, %v1152
    %v1154 = vadd.f32 %v1148, %v1152
    %v1155 = vlaneseq
    %v1156 = vshrl.u32 %v1155, 7
    %v1157 = vsub.s32 0, %v1156
    %v1158 = vrot.slane %v81, %v1157
    %v1160 = vsel %vm168, %v1153, 0
    %v1163 = vsel %vm168, %v1154, 0
    %1165 = vmatprep.subr.mxu0 0.0
    %1166 = vmatpush1.msra.mxu0 %v40
    %1167 = vmatprep.subr.mxu0 0.0
    %1168 = vmatpush1.msra.mxu0 %v41
    %1169 = vmatprep.subr.mxu0 0.0
    %1170 = vmatpush1.msra.mxu0 %v42
    %1171 = vmatprep.subr.mxu0 0.0
    %1172 = vmatpush1.msra.mxu0 %v43
    %1173 = vmatprep.subr.mxu0 0.0
    %1174 = vmatpush1.msra.mxu0 0.0
    %1175 = vmatprep.subr.mxu0 0.0
    %1176 = vmatpush1.msra.mxu0 0.0
    %1177 = vmatprep.subr.mxu0 0.0
    %1178 = vmatpush1.msra.mxu0 0.0
    %1179 = vmatprep.subr.mxu0 0.0
    %1180 = vmatpush1.msra.mxu0 0.0
    %1181 = vmatprep.subr.mxu0 0.0
    %1182 = vmatpush1.msra.mxu0 0.0
    %1183 = vmatprep.subr.mxu0 0.0
    %1184 = vmatpush1.msra.mxu0 0.0
    %1185 = vmatprep.subr.mxu0 0.0
    %1186 = vmatpush1.msra.mxu0 0.0
    %1187 = vmatprep.subr.mxu0 0.0
    %1188 = vmatpush1.msra.mxu0 0.0
    %1189 = vmatprep.subr.mxu0 0.0
    %1190 = vmatpush1.msra.mxu0 0.0
    %1191 = vmatprep.subr.mxu0 0.0
    %1192 = vmatpush1.msra.mxu0 0.0
    %1193 = vmatprep.subr.mxu0 0.0
    %1194 = vmatpush1.msra.mxu0 0.0
    %1195 = vmatprep.subr.mxu0 0.0
    %1196 = vmatpush1.msra.mxu0 0.0
    %1197 = vmatprep.subr.mxu0 0.0
    %1198 = vmatpush1.msra.mxu0 0.0
    %1199 = vmatprep.subr.mxu0 0.0
    %1200 = vmatpush1.msra.mxu0 0.0
    %1201 = vmatprep.subr.mxu0 0.0
    %1202 = vmatpush1.msra.mxu0 0.0
    %1203 = vmatprep.subr.mxu0 0.0
    %1204 = vmatpush1.msra.mxu0 0.0
    %1205 = vmatprep.subr.mxu0 0.0
    %1206 = vmatpush1.msra.mxu0 0.0
    %1207 = vmatprep.subr.mxu0 0.0
    %1208 = vmatpush1.msra.mxu0 0.0
    %1209 = vmatprep.subr.mxu0 0.0
    %1210 = vmatpush1.msra.mxu0 0.0
    %1211 = vmatprep.subr.mxu0 0.0
    %1212 = vmatpush1.msra.mxu0 0.0
    %1213 = vmatprep.subr.mxu0 0.0
    %1214 = vmatpush1.msra.mxu0 0.0
    %1215 = vmatprep.subr.mxu0 0.0
    %1216 = vmatpush1.msra.mxu0 0.0
    %1217 = vmatprep.subr.mxu0 0.0
    %1218 = vmatpush1.msra.mxu0 0.0
    %1219 = vmatprep.subr.mxu0 0.0
    %1220 = vmatpush1.msra.mxu0 0.0
    %1221 = vmatprep.subr.mxu0 0.0
    %1222 = vmatpush1.msra.mxu0 0.0
    %1223 = vmatprep.subr.mxu0 0.0
    %1224 = vmatpush1.msra.mxu0 0.0
    %1225 = vmatprep.subr.mxu0 0.0
    %1226 = vmatpush1.msra.mxu0 0.0
    %1227 = vmatprep.subr.mxu0 0.0
    %1228 = vmatpush1.msra.mxu0 0.0
    %1229 = vmatprep.mubr.f32.mxu0 0.0
    %1230 = vmatmul.mubr.f32.gmra.mrb[0].mxu0 %v1160
    %v1231 = vpop.f32.mrb[0].mxu0
    %v1232 = vadd.f32 %v1158, %v1231
    %v1233 = vpop.f32.mrb[0].mxu0
    %1234 = vmatprep.mubr.f32.mxu0 0.0
    %1235 = vmatmul.mubr.f32.gmra.mrb[0].mxu0 %v1163
    %v1236 = vpop.f32.mrb[0].mxu0
    %v1237 = vadd.f32 %v1158, %v1236
    %v1238 = vpop.f32.mrb[0].mxu0
    %1239 = vdwg.mxu0
    %v1240 = vtanh.pop %v1232
    %v1241 = vtanh.pop %v1237
    %1242 = vrot.lane.b32.xlu0 %v717, 32
    %v1243 = vpop.permute.xlu0 %1242
    %1244 = vrot.lane.b32.xlu0 %v719, 32
    %v1245 = vpop.permute.xlu0 %1244
    %1250 = vrot.lane.b32.xlu0 %v1240, 96
    %v1251 = vpop.permute.xlu0 %1250
    %1252 = vrot.lane.b32.xlu0 %v1241, 96
    %v1253 = vpop.permute.xlu0 %1252
    %v1256 = vsel %vm168, %v1153, %v1243
    %v1257 = vsel %vm168, %v1154, %v1245
    %vm1258 = vcmask 785408
    %v1259 = vsel %vm1258, %v1256, %v1251
    %v1260 = vsel %vm1258, %v1257, %v1253
    %1261 = vst [vmem:[%s2] sm:$0xff] %v1259
    %1262 = vst [vmem:[%s2 + $0x8] sm:$0xff] %v1260
    // Predicated region
    $region14: #{sequence_backbone_forward.1} parent=1 // pred_check
      _
    $region15: #{sequence_backbone_forward.1} parent=1 // pred_check_branch
      %1264 = sbr.rel (0) target = $region17
    $region16: #{sequence_backbone_forward.1} parent=1 // pred_region
      _
    $region17: #{sequence_backbone_forward.1} parent=1 // pred_fallthru
      _
    // Predicated region
    $region18: #{sequence_backbone_forward.1} parent=1 // pred_check
      _
    $region19: #{sequence_backbone_forward.1} parent=1 // pred_check_branch
      %1266 = sbr.rel (0) target = $region21
    $region20: #{sequence_backbone_forward.1} parent=1 // pred_region
      _
    $region21: #{sequence_backbone_forward.1} parent=1 // pred_fallthru
      _
    %1267 = vsyncpa [#allocation3], 1

</llo_original>
